<compile_context>
chip_gen: v6e
topology: v6e:2x2x1
jax: 0.10.0
libtpu: 0.0.40
codegen_flags: <defaults>
</compile_context>

<pallas_src>
import functools
import math

import numpy as np
import jax
import jax.numpy as jnp
from jax.experimental import pallas as pl
from jax.experimental.pallas import tpu as pltpu

HIDDEN = 32          # PointNetLayer(3, 32)
NUM_CLASSES = 10     # dataset.num_classes unknown -> synthetic 10
RADIUS = 0.3
FPS_RATIO = 0.25
NEG_BIG = -1.0e30    # finite "-inf": avoids inf arithmetic and NaN logits for empty graphs
RANGE_EMPTY_MIN = 2 ** 30   # sentinel [min,max] for all-padding tiles -> never overlaps
RANGE_EMPTY_MAX = -2 ** 30


def _round_up(a, b):
    return ((a + b - 1) // b) * b


def _tpu_defaults():
    """(pack, tm_max, tn_max, vmem_limit_bytes) per TPU generation."""
    try:
        kind = jax.devices()[0].device_kind.lower()
    except Exception:  # pragma: no cover - CPU / unknown backend fallback
        kind = ""
    if any(v in kind for v in ("v2", "v3", "v4", "v5")):
        # 128-wide MXU, 128 MiB VMEM -> P*H = 128, larger neighbour chunks.
        return 4, 128, 512, 64 * 1024 * 1024
    if "v6" in kind:
        # 256-wide MXU, 128 MiB VMEM.
        return 8, 128, 512, 96 * 1024 * 1024
    # v7x (64 MiB VMEM, 2 TCs) and unknown: 256-wide MXU, conservative VMEM.
    return 8, 128, 256, 40 * 1024 * 1024


def _block_diag(w, pack):
    """Block-diagonal replication of a [fin, fout] weight -> [P*fin, P*fout]."""
    fin, fout = w.shape
    out = jnp.zeros((pack * fin, pack * fout), w.dtype)
    for p in range(pack):
        out = out.at[p * fin:(p + 1) * fin, p * fout:(p + 1) * fout].set(w)
    return out


def _tile_graph_ranges(ids, tile):
    """Per-tile [min_graph, max_graph] over valid (>=0) ids; sentinel if empty."""
    ids = np.asarray(ids)
    n_tiles = ids.shape[0] // tile
    rng = np.zeros((n_tiles, 2), np.int64)
    for t in range(n_tiles):
        seg = ids[t * tile:(t + 1) * tile]
        valid = seg >= 0
        if valid.any():
            rng[t, 0] = seg[valid].min()
            rng[t, 1] = seg[valid].max()
        else:
            rng[t, 0] = RANGE_EMPTY_MIN
            rng[t, 1] = RANGE_EMPTY_MAX
    return jnp.asarray(rng, jnp.int32)


# ----------------------------------------------------------------------------
# Kernel 1: radius mask + message MLP + 'max' neighbour aggregation.
# ----------------------------------------------------------------------------
def _pointnet_msg_kernel(s_rng_ref, a_rng_ref,
                         pos_s_ref, batch_s_ref, pos_aT_ref, batch_a_ref,
                         pos_ap_ref, w1t_ref, w1p_ref, b1p_ref, w2p_ref,
                         x_ref, *, radius2, pack):
    """s_rng_ref   : [n_i, 2] SMEM  per-sampled-tile [min,max] graph id
       a_rng_ref   : [n_k, 2] SMEM  per-neighbour-chunk [min,max] graph id
       pos_s_ref   : [tm, 3]        tile of sampled (target) points
       batch_s_ref : [tm, 1]        int32 graph ids (-2 for padding rows)
       pos_aT_ref  : [3, tn]        neighbour chunk, transposed (lane-dense)
       batch_a_ref : [1, tn]        int32 graph ids (-1 for padding cols)
       pos_ap_ref  : [tn/P, P*3]    neighbour chunk in packed layout
                                    (group p = local columns p*jn .. (p+1)*jn-1)
       w1t_ref     : [3, P*H]       W1 tiled P times (for the sampled points)
       w1p_ref     : [P*3, P*H]     block-diagonal W1 (for packed neighbours)
       b1p_ref     : [1, P*H]       b1 tiled P times
       w2p_ref     : [P*H, P*H]     block-diagonal W2 (bf16)
       x_ref       : [tm, H]        per-sampled-point aggregated feature (running max)
    """
    tm = pos_s_ref.shape[0]
    tn = pos_aT_ref.shape[1]
    ph = w2p_ref.shape[1]
    hdim = ph // pack
    jn = tn // pack

    i = pl.program_id(0)
    k = pl.program_id(1)

    @pl.when(k == 0)
    def _init():
        x_ref[...] = jnp.full_like(x_ref, NEG_BIG)

    # Skip (i, k) tile pairs whose graph-id ranges cannot overlap: for a batch
    # of B similar-size graphs only ~1/B of pairs hold any valid edge.
    overlap = jnp.logical_and(s_rng_ref[i, 0] <= a_rng_ref[k, 1],
                              a_rng_ref[k, 0] <= s_rng_ref[i, 1])

    @pl.when(overlap)
    def _compute():
        pos_s = pos_s_ref[...]                 # [tm, 3]
        pos_t = pos_aT_ref[...]                # [3, tn]

        # --- pairwise squared distance via matmul identity (lane-dense [tm,tn])
        cross = jnp.dot(pos_s, pos_t, preferred_element_type=jnp.float32)
        sq_s = jnp.sum(pos_s * pos_s, axis=-1, keepdims=True)               # [tm, 1]
        sq_a = jnp.sum(pos_t * pos_t, axis=0, keepdims=True)                # [1, tn]
        d2 = sq_s + sq_a - 2.0 * cross                                      # [tm, tn]

        same_graph = batch_s_ref[...] == batch_a_ref[...]                   # [tm, tn]
        valid = jnp.logical_and(same_graph, d2 <= radius2)
        penalty = jnp.where(valid, 0.0, NEG_BIG)                            # [tm, tn] f32

        # Expand the [tm, tn] penalty to the packed lane layout [tm, jn, P*H]:
        # group p of packed row j corresponds to local column p*jn + j, so each
        # group's penalty is a *contiguous* lane slice broadcast over H lanes.
        pen_slabs = [
            jnp.broadcast_to(penalty[:, p * jn:(p + 1) * jn][:, :, None],
                             (tm, jn, hdim))
            for p in range(pack)
        ]
        pen_exp = jnp.concatenate(pen_slabs, axis=2)                        # [tm, jn, P*H]

        # --- message MLP layer 1, directly in the packed layout ------------
        # (pos_j - pos_i) @ W1 == pos_j @ W1 - pos_i @ W1
        proj_a = jnp.dot(pos_ap_ref[...], w1p_ref[...],
                         preferred_element_type=jnp.float32)                # [jn, P*H]
        shift_s = (jnp.dot(pos_s, w1t_ref[...],
                           preferred_element_type=jnp.float32)
                   - b1p_ref[...])                                          # [tm, P*H]
        h1 = jnp.maximum(proj_a[None, :, :] - shift_s[:, None, :], 0.0)     # [tm, jn, P*H]

        # --- layer 2: block-diagonal packed bf16 MXU matmul, f32 accumulation.
        # P*H = 128 (v5e) / 256 (v6e, v7x) fills the MXU contraction + output
        # lanes; jn is a multiple of 8 so the reshape is layout-preserving.
        h2 = jnp.dot(h1.astype(jnp.bfloat16).reshape(tm * jn, ph),
                     w2p_ref[...],
                     preferred_element_type=jnp.float32).reshape(tm, jn, ph)

        # --- masked 'max' aggregation (b2 is hoisted to kernel 2) ----------
        msg = h2 + pen_exp
        part = jnp.max(msg, axis=1)                                         # [tm, P*H]
        x_new = part[:, 0:hdim]
        for p in range(1, pack):
            x_new = jnp.maximum(x_new, part[:, p * hdim:(p + 1) * hdim])
        x_ref[...] = jnp.maximum(x_ref[...], x_new)


# ----------------------------------------------------------------------------
# Kernel 2: global_max_pool (vectorized segment max) + b2 + Linear(H, C).
# ----------------------------------------------------------------------------
def _pool_classify_kernel(x_ref, batch_s_ref, b2_ref, wc_ref, bc_ref,
                          out_ref, pooled_ref):
    tm = x_ref.shape[0]
    gpad = pooled_ref.shape[0]

    @pl.when(pl.program_id(0) == 0)
    def _init():
        pooled_ref[...] = jnp.full_like(pooled_ref, NEG_BIG)

    # Vectorized segment max: one full-block read-modify-write of pooled_ref.
    g_iota = jax.lax.broadcasted_iota(jnp.int32, (tm, gpad), 1)             # [tm, gpad]
    in_g = g_iota == batch_s_ref[...]                                       # [tm, gpad]
    cand = jnp.where(in_g[:, :, None], x_ref[...][:, None, :], NEG_BIG)     # [tm, gpad, H]
    pooled_ref[...] = jnp.maximum(pooled_ref[...], jnp.max(cand, axis=0))

    @pl.when(pl.program_id(0) == pl.num_programs(0) - 1)
    def _final():
        pooled = pooled_ref[...]
        # Graphs with no valid edge stay at ~NEG_BIG -> zero them (PyG-divergent
        # but NaN-free); otherwise add the hoisted MLP bias b2.
        empty = pooled <= NEG_BIG * 0.5
        pooled = jnp.where(empty, 0.0, pooled + b2_ref[...])
        out_ref[...] = (jnp.dot(pooled, wc_ref[...],
                                preferred_element_type=jnp.float32) + bc_ref[...])


# ----------------------------------------------------------------------------
# Plain-JAX / NumPy glue
# ----------------------------------------------------------------------------
def fps_numpy(pos, batch, ratio):
    """Farthest point sampling per graph (deterministic start at first point)."""
    pos = np.asarray(pos, np.float64)
    batch = np.asarray(batch)
    selected = []
    for b in np.unique(batch):
        idx = np.nonzero(batch == b)[0]
        p = pos[idx]
        k = int(math.ceil(ratio * p.shape[0]))
        chosen = [0]
        mind = np.sum((p - p[0]) ** 2, axis=-1)
        for _ in range(k - 1):
            nxt = int(np.argmax(mind))
            chosen.append(nxt)
            mind = np.minimum(mind, np.sum((p - p[nxt]) ** 2, axis=-1))
        selected.append(idx[np.asarray(chosen)])
    return np.concatenate(selected)


def init_params(key):
    """Deterministic init matching PyTorch Linear shapes (uniform +-1/sqrt(fan_in))."""
    ks = jax.random.split(key, 6)

    def lin(kw, kb, fan_in, fan_out):
        bound = 1.0 / math.sqrt(fan_in)
        w = jax.random.uniform(kw, (fan_in, fan_out), jnp.float32, -bound, bound)
        b = jax.random.uniform(kb, (1, fan_out), jnp.float32, -bound, bound)
        return w, b

    w1, b1 = lin(ks[0], ks[1], 3, HIDDEN)
    w2, b2 = lin(ks[2], ks[3], HIDDEN, HIDDEN)
    wc, bc = lin(ks[4], ks[5], HIDDEN, NUM_CLASSES)
    return (w1, b1, w2, b2, wc, bc)


def pointnet_forward(pos, batch, params, num_graphs,
                     pack=None, tm_max=None, tn_max=None, vmem_limit=None):
    pos = jnp.asarray(pos, jnp.float32)
    batch = jnp.asarray(batch, jnp.int32)
    N = pos.shape[0]

    d_pack, d_tm, d_tn, d_vmem = _tpu_defaults()
    pack = d_pack if pack is None else pack
    tm_max = d_tm if tm_max is None else tm_max
    tn_max = d_tn if tn_max is None else tn_max
    vmem_limit = d_vmem if vmem_limit is None else vmem_limit

    # fps -> sampled points (host glue; sequential data-dependent selection)
    sample_idx = fps_numpy(np.asarray(pos), np.asarray(batch), FPS_RATIO)
    pos_s = pos[sample_idx]
    batch_s = batch[sample_idx]
    M = pos_s.shape[0]

    w1, b1, w2, b2, wc, bc = params
    C = wc.shape[1]
    H = HIDDEN
    PH = pack * H

    # Tile sizes: sampled tile tm (sublane axis), neighbour chunk tn (lane axis).
    m_rounded = _round_up(max(M, 1), 8)
    tm = min(tm_max, m_rounded)
    if m_rounded // tm < 2 and tm > 8:
        # >= 2 sampled tiles so the "parallel" axis can shard across v7x's 2 TCs.
        tm = max(8, _round_up(tm // 2, 8))
    Mpad = _round_up(m_rounded, tm)
    tn = min(tn_max, _round_up(N, 128))
    Npad = _round_up(N, tn)
    gpad = _round_up(max(num_graphs, 1), 8)
    jn = tn // pack

    # Padded operands.
    pos_all_p = jnp.zeros((Npad, 3), jnp.float32).at[:N].set(pos)
    pos_allT_p = jnp.zeros((3, Npad), jnp.float32).at[:, :N].set(pos.T)
    batch_all_p = jnp.full((1, Npad), -1, jnp.int32).at[0, :N].set(batch)
    pos_s_p = jnp.zeros((Mpad, 3), jnp.float32).at[:M].set(pos_s)
    batch_s_p = jnp.full((Mpad, 1), -2, jnp.int32).at[:M, 0].set(batch_s)

    # Packed neighbour positions: within each tn-chunk, group p = local columns
    # p*jn .. (p+1)*jn-1 -> packed row j holds [pos(p=0), pos(p=1), ...].
    pos_ap = (pos_all_p.reshape(Npad // tn, pack, jn, 3)
              .transpose(0, 2, 1, 3)
              .reshape(Npad // pack, pack * 3))

    # Packed weights (built once on the host).
    w1p = _block_diag(w1, pack)                        # [P*3, P*H]
    w1t = jnp.tile(w1, (1, pack))                      # [3,   P*H]
    b1p = jnp.tile(b1, (1, pack))                      # [1,   P*H]
    w2p = _block_diag(w2, pack).astype(jnp.bfloat16)   # [P*H, P*H]

    # Per-tile graph-id ranges (scalar prefetch) for cross-graph tile skipping.
    batch_s_host = np.full((Mpad,), -2, np.int64)
    batch_s_host[:M] = np.asarray(batch_s)
    batch_a_host = np.full((Npad,), -1, np.int64)
    batch_a_host[:N] = np.asarray(batch)
    s_rng = _tile_graph_ranges(batch_s_host, tm)
    a_rng = _tile_graph_ranges(batch_a_host, tn)

    flops = int(2 * Mpad * Npad * (H * H + 3)
                + 2 * (Mpad // tm) * Npad * 3 * H
                + 2 * (Npad // tn) * Mpad * 3 * PH)
    bytes_accessed = int(4 * (Mpad * (4 + H) + Npad * 10)
                         + 4 * (9 * PH) + 2 * PH * PH)

    # ---- kernel 1: per-sampled-point aggregated features --------------------
    x_feat = pl.pallas_call(
        functools.partial(_pointnet_msg_kernel,
                          radius2=RADIUS * RADIUS, pack=pack),
        out_shape=jax.ShapeDtypeStruct((Mpad, H), jnp.float32),
        grid_spec=pltpu.PrefetchScalarGridSpec(
            num_scalar_prefetch=2,
            grid=(Mpad // tm, Npad // tn),
            in_specs=[
                pl.BlockSpec((tm, 3), lambda i, k, sr, ar: (i, 0)),          # pos_sampled
                pl.BlockSpec((tm, 1), lambda i, k, sr, ar: (i, 0)),          # batch_sampled
                pl.BlockSpec((3, tn), lambda i, k, sr, ar: (0, k)),          # pos_all^T
                pl.BlockSpec((1, tn), lambda i, k, sr, ar: (0, k)),          # batch_all
                pl.BlockSpec((jn, pack * 3), lambda i, k, sr, ar: (k, 0)),   # pos_all packed
                pl.BlockSpec((3, PH), lambda i, k, sr, ar: (0, 0)),          # W1 tiled
                pl.BlockSpec((pack * 3, PH), lambda i, k, sr, ar: (0, 0)),   # W1 block-diag
                pl.BlockSpec((1, PH), lambda i, k, sr, ar: (0, 0)),          # b1 tiled
                pl.BlockSpec((PH, PH), lambda i, k, sr, ar: (0, 0)),         # W2 block-diag
            ],
            out_specs=pl.BlockSpec((tm, H), lambda i, k, sr, ar: (i, 0)),
        ),
        compiler_params=pltpu.CompilerParams(
            dimension_semantics=("parallel", "arbitrary"),
            vmem_limit_bytes=vmem_limit),
        cost_estimate=pl.CostEstimate(flops=flops, transcendentals=0,
                                      bytes_accessed=bytes_accessed),
    )(s_rng, a_rng, pos_s_p, batch_s_p, pos_allT_p, batch_all_p, pos_ap,
      w1t, w1p, b1p, w2p)

    # ---- kernel 2: per-graph max pool + hoisted b2 + classifier -------------
    logits_pad = pl.pallas_call(
        _pool_classify_kernel,
        out_shape=jax.ShapeDtypeStruct((gpad, C), jnp.float32),
        grid_spec=pltpu.PrefetchScalarGridSpec(
            num_scalar_prefetch=0,
            grid=(Mpad // tm,),
            in_specs=[
                pl.BlockSpec((tm, H), lambda i: (i, 0)),
                pl.BlockSpec((tm, 1), lambda i: (i, 0)),
                pl.BlockSpec((1, H), lambda i: (0, 0)),
                pl.BlockSpec((H, C), lambda i: (0, 0)),
                pl.BlockSpec((1, C), lambda i: (0, 0)),
            ],
            out_specs=pl.BlockSpec((gpad, C), lambda i: (0, 0)),
            scratch_shapes=[pltpu.VMEM((gpad, H), jnp.float32)],
        ),
        compiler_params=pltpu.CompilerParams(dimension_semantics=("arbitrary",)),
    )(x_feat, batch_s_p, b2, wc, bc)

    return logits_pad[:num_graphs], pos_s, batch_s


def reference_forward(pos, batch, pos_s, batch_s, params, num_graphs,
                      w2_dtype=jnp.float32):
    """Plain-JAX reference of the same dense formulation."""
    w1, b1, w2, b2, wc, bc = params
    diff = pos[None, :, :] - pos_s[:, None, :]                  # [M, N, 3]
    d2 = jnp.sum(diff * diff, axis=-1)
    mask = (batch_s[:, None] == batch[None, :]) & (d2 <= RADIUS * RADIUS)
    h1 = jnp.maximum(diff @ w1 + b1[0], 0.0)
    h = jnp.matmul(h1.astype(w2_dtype), w2.astype(w2_dtype),
                   preferred_element_type=jnp.float32) + b2[0]   # [M, N, H]
    msg = jnp.where(mask[:, :, None], h, -jnp.inf)
    x = jnp.max(msg, axis=1)                                     # [M, H]
    pooled = jnp.stack([
        jnp.max(jnp.where((batch_s == g)[:, None], x, -jnp.inf), axis=0)
        for g in range(num_graphs)])
    return pooled @ wc + bc[0]


if __name__ == "__main__":
    key = jax.random.PRNGKey(0)
    kpos, kparams = jax.random.split(key)

    num_graphs = 2
    pts_per_graph = 32
    pos = jax.random.uniform(kpos, (num_graphs * pts_per_graph, 3), jnp.float32)
    batch = jnp.repeat(jnp.arange(num_graphs, dtype=jnp.int32), pts_per_graph)
    params = init_params(kparams)

    logits, pos_s, batch_s = pointnet_forward(pos, batch, params, num_graphs)
    logits = jax.block_until_ready(logits)
    assert logits.shape == (num_graphs, NUM_CLASSES)

    # numerics-matched reference (W2 matmul with bf16 inputs, f32 accumulation)
    ref_bf16 = reference_forward(pos, batch, pos_s, batch_s, params, num_graphs,
                                 w2_dtype=jnp.bfloat16)
    np.testing.assert_allclose(np.asarray(logits), np.asarray(ref_bf16),
                               rtol=2e-2, atol=2e-2)
    # coarse sanity check against the full-f32 reference
    ref_f32 = reference_forward(pos, batch, pos_s, batch_s, params, num_graphs,
                                w2_dtype=jnp.float32)
    np.testing.assert_allclose(np.asarray(logits), np.asarray(ref_f32),
                               rtol=1.5e-1, atol=1.5e-1)
    print("KERNEL_OK")
</pallas_src>

<mosaic_0001>
module attributes {stable_mosaic.version = 11 : i64} {
  func.func @_pointnet_msg_kernel(%arg0: i32, %arg1: i32, %arg2: memref<2x2xi32, #tpu.memory_space<smem>>, %arg3: memref<1x2xi32, #tpu.memory_space<smem>>, %arg4: memref<8x3xf32, #tpu.memory_space<vmem>>, %arg5: memref<8x1xi32, #tpu.memory_space<vmem>>, %arg6: memref<3x128xf32, #tpu.memory_space<vmem>>, %arg7: memref<1x128xi32, #tpu.memory_space<vmem>>, %arg8: memref<16x24xf32, #tpu.memory_space<vmem>>, %arg9: memref<3x256xf32, #tpu.memory_space<vmem>>, %arg10: memref<24x256xf32, #tpu.memory_space<vmem>>, %arg11: memref<1x256xf32, #tpu.memory_space<vmem>>, %arg12: memref<256x256xbf16, #tpu.memory_space<vmem>>, %arg13: memref<8x32xf32, #tpu.memory_space<vmem>>) attributes {dimension_semantics = [#tpu.dimension_semantics<parallel>, #tpu.dimension_semantics<arbitrary>], iteration_bounds = array<i64: 2, 1>, scalar_prefetch = 2 : i64, scratch_operands = 0 : i64, tpu.core_type = #tpu.core_type<tc>, window_params = [{transform_indices = @transform_0, window_bounds = array<i64: 8, 3>}, {transform_indices = @transform_1, window_bounds = array<i64: 8, 1>}, {transform_indices = @transform_2, window_bounds = array<i64: 3, 128>}, {transform_indices = @transform_3, window_bounds = array<i64: 1, 128>}, {transform_indices = @transform_4, window_bounds = array<i64: 16, 24>}, {pipeline_mode = #tpu.pipeline_mode<synchronous>, transform_indices = @transform_5, window_bounds = array<i64: 3, 256>}, {pipeline_mode = #tpu.pipeline_mode<synchronous>, transform_indices = @transform_6, window_bounds = array<i64: 24, 256>}, {pipeline_mode = #tpu.pipeline_mode<synchronous>, transform_indices = @transform_7, window_bounds = array<i64: 1, 256>}, {pipeline_mode = #tpu.pipeline_mode<synchronous>, transform_indices = @transform_8, window_bounds = array<i64: 256, 256>}, {transform_indices = @transform_9, window_bounds = array<i64: 8, 32>}]} {
    %c0_i32 = arith.constant 0 : i32
    %0 = arith.cmpi eq, %arg1, %c0_i32 : i32
    %1 = arith.extui %0 : i1 to i32
    %c0_i32_0 = arith.constant 0 : i32
    %2 = arith.cmpi ne, %1, %c0_i32_0 : i32
    scf.if %2 {
      %cst = arith.constant -1.000000e+30 : f32
      %16 = vector.broadcast %cst : f32 to vector<8x32xf32>
      %c0_4 = arith.constant 0 : index
      %c0_5 = arith.constant 0 : index
      %17 = vector.load %arg13[%c0_4, %c0_5] : memref<8x32xf32, #tpu.memory_space<vmem>>, vector<8x32xf32>
      tpu.vector_store %arg13[%c0_4, %c0_5], %16 {strides = array<i32>} : memref<8x32xf32, #tpu.memory_space<vmem>>, vector<8x32xf32>,
    } else {
    }
    %3 = arith.index_cast %arg0 : i32 to index
    %c0 = arith.constant 0 : index
    %4 = memref.load %arg2[%3, %c0] : memref<2x2xi32, #tpu.memory_space<smem>>
    %5 = arith.index_cast %arg1 : i32 to index
    %c1 = arith.constant 1 : index
    %6 = memref.load %arg3[%5, %c1] : memref<1x2xi32, #tpu.memory_space<smem>>
    %7 = arith.cmpi sle, %4, %6 : i32
    %8 = arith.index_cast %arg1 : i32 to index
    %c0_1 = arith.constant 0 : index
    %9 = memref.load %arg3[%8, %c0_1] : memref<1x2xi32, #tpu.memory_space<smem>>
    %10 = arith.index_cast %arg0 : i32 to index
    %c1_2 = arith.constant 1 : index
    %11 = memref.load %arg2[%10, %c1_2] : memref<2x2xi32, #tpu.memory_space<smem>>
    %12 = arith.cmpi sle, %9, %11 : i32
    %13 = arith.andi %7, %12 : i1
    %14 = arith.extui %13 : i1 to i32
    %c0_i32_3 = arith.constant 0 : i32
    %15 = arith.cmpi ne, %14, %c0_i32_3 : i32
    scf.if %15 {
      %c0_4 = arith.constant 0 : index
      %c0_5 = arith.constant 0 : index
      %16 = vector.load %arg4[%c0_4, %c0_5] : memref<8x3xf32, #tpu.memory_space<vmem>>, vector<8x3xf32>
      %c0_6 = arith.constant 0 : index
      %c0_7 = arith.constant 0 : index
      %17 = vector.load %arg6[%c0_6, %c0_7] : memref<3x128xf32, #tpu.memory_space<vmem>>, vector<3x128xf32>
      %cst = arith.constant dense<0.000000e+00> : vector<8x128xf32>
      %18 = tpu.matmul %16, %17, %cst {dimension_numbers = #tpu.dot_dimension_numbers<[1], [0], [0], [1], [0, 0, 1, 1], [], []>} : vector<8x3xf32>, vector<3x128xf32>, vector<8x128xf32> -> vector<8x128xf32>
      %19 = arith.mulf %16, %16 : vector<8x3xf32>
      %cst_8 = arith.constant dense<0.000000e+00> : vector<8xf32>
      %20 = vector.multi_reduction <add>, %19, %cst_8 [1] : vector<8x3xf32> to vector<8xf32>
      %21 = vector.shape_cast %20 : vector<8xf32> to vector<8x1xf32>
      %22 = arith.mulf %17, %17 : vector<3x128xf32>
      %cst_9 = arith.constant dense<0.000000e+00> : vector<128xf32>
      %23 = vector.multi_reduction <add>, %22, %cst_9 [0] : vector<3x128xf32> to vector<128xf32>
      %24 = vector.shape_cast %23 : vector<128xf32> to vector<1x128xf32>
      %25 = vector.broadcast %21 : vector<8x1xf32> to vector<8x128xf32>
      %26 = vector.broadcast %24 : vector<1x128xf32> to vector<8x128xf32>
      %27 = arith.addf %25, %26 : vector<8x128xf32>
      %cst_10 = arith.constant 2.000000e+00 : f32
      %28 = vector.broadcast %cst_10 : f32 to vector<8x128xf32>
      %29 = arith.mulf %28, %18 : vector<8x128xf32>
      %30 = arith.subf %27, %29 : vector<8x128xf32>
      %c0_11 = arith.constant 0 : index
      %c0_12 = arith.constant 0 : index
      %31 = vector.load %arg5[%c0_11, %c0_12] : memref<8x1xi32, #tpu.memory_space<vmem>>, vector<8x1xi32>
      %c0_13 = arith.constant 0 : index
      %c0_14 = arith.constant 0 : index
      %32 = vector.load %arg7[%c0_13, %c0_14] : memref<1x128xi32, #tpu.memory_space<vmem>>, vector<1x128xi32>
      %33 = vector.broadcast %31 : vector<8x1xi32> to vector<8x128xi32>
      %34 = vector.broadcast %32 : vector<1x128xi32> to vector<8x128xi32>
      %35 = arith.cmpi eq, %33, %34 : vector<8x128xi32>
      %cst_15 = arith.constant 9.000000e-02 : f32
      %36 = vector.broadcast %cst_15 : f32 to vector<8x128xf32>
      %37 = arith.cmpf ole, %30, %36 : vector<8x128xf32>
      %38 = arith.andi %35, %37 : vector<8x128xi1>
      %cst_16 = arith.constant 0.000000e+00 : f32
      %cst_17 = arith.constant -1.000000e+30 : f32
      %39 = vector.broadcast %cst_16 : f32 to vector<8x128xf32>
      %40 = vector.broadcast %cst_17 : f32 to vector<8x128xf32>
      %41 = arith.select %38, %39, %40 : vector<8x128xi1>, vector<8x128xf32>
      %42 = vector.extract_strided_slice %41 {offsets = [0, 0], sizes = [8, 16], strides = [1, 1]} : vector<8x128xf32> to vector<8x16xf32>
      %43 = vector.shape_cast %42 : vector<8x16xf32> to vector<8x16x1xf32>
      %44 = vector.shape_cast %43 : vector<8x16x1xf32> to vector<8x16x1xf32>
      %45 = vector.broadcast %44 : vector<8x16x1xf32> to vector<8x16x32xf32>
      %46 = vector.extract_strided_slice %41 {offsets = [0, 16], sizes = [8, 16], strides = [1, 1]} : vector<8x128xf32> to vector<8x16xf32>
      %47 = vector.shape_cast %46 : vector<8x16xf32> to vector<8x16x1xf32>
      %48 = vector.shape_cast %47 : vector<8x16x1xf32> to vector<8x16x1xf32>
      %49 = vector.broadcast %48 : vector<8x16x1xf32> to vector<8x16x32xf32>
      %50 = vector.extract_strided_slice %41 {offsets = [0, 32], sizes = [8, 16], strides = [1, 1]} : vector<8x128xf32> to vector<8x16xf32>
      %51 = vector.shape_cast %50 : vector<8x16xf32> to vector<8x16x1xf32>
      %52 = vector.shape_cast %51 : vector<8x16x1xf32> to vector<8x16x1xf32>
      %53 = vector.broadcast %52 : vector<8x16x1xf32> to vector<8x16x32xf32>
      %54 = vector.extract_strided_slice %41 {offsets = [0, 48], sizes = [8, 16], strides = [1, 1]} : vector<8x128xf32> to vector<8x16xf32>
      %55 = vector.shape_cast %54 : vector<8x16xf32> to vector<8x16x1xf32>
      %56 = vector.shape_cast %55 : vector<8x16x1xf32> to vector<8x16x1xf32>
      %57 = vector.broadcast %56 : vector<8x16x1xf32> to vector<8x16x32xf32>
      %58 = vector.extract_strided_slice %41 {offsets = [0, 64], sizes = [8, 16], strides = [1, 1]} : vector<8x128xf32> to vector<8x16xf32>
      %59 = vector.shape_cast %58 : vector<8x16xf32> to vector<8x16x1xf32>
      %60 = vector.shape_cast %59 : vector<8x16x1xf32> to vector<8x16x1xf32>
      %61 = vector.broadcast %60 : vector<8x16x1xf32> to vector<8x16x32xf32>
      %62 = vector.extract_strided_slice %41 {offsets = [0, 80], sizes = [8, 16], strides = [1, 1]} : vector<8x128xf32> to vector<8x16xf32>
      %63 = vector.shape_cast %62 : vector<8x16xf32> to vector<8x16x1xf32>
      %64 = vector.shape_cast %63 : vector<8x16x1xf32> to vector<8x16x1xf32>
      %65 = vector.broadcast %64 : vector<8x16x1xf32> to vector<8x16x32xf32>
      %66 = vector.extract_strided_slice %41 {offsets = [0, 96], sizes = [8, 16], strides = [1, 1]} : vector<8x128xf32> to vector<8x16xf32>
      %67 = vector.shape_cast %66 : vector<8x16xf32> to vector<8x16x1xf32>
      %68 = vector.shape_cast %67 : vector<8x16x1xf32> to vector<8x16x1xf32>
      %69 = vector.broadcast %68 : vector<8x16x1xf32> to vector<8x16x32xf32>
      %70 = vector.extract_strided_slice %41 {offsets = [0, 112], sizes = [8, 16], strides = [1, 1]} : vector<8x128xf32> to vector<8x16xf32>
      %71 = vector.shape_cast %70 : vector<8x16xf32> to vector<8x16x1xf32>
      %72 = vector.shape_cast %71 : vector<8x16x1xf32> to vector<8x16x1xf32>
      %73 = vector.broadcast %72 : vector<8x16x1xf32> to vector<8x16x32xf32>
      %74 = tpu.concatenate %45, %49, %53, %57, %61, %65, %69, %73 in 2 : vector<8x16x32xf32>, vector<8x16x32xf32>, vector<8x16x32xf32>, vector<8x16x32xf32>, vector<8x16x32xf32>, vector<8x16x32xf32>, vector<8x16x32xf32>, vector<8x16x32xf32> -> vector<8x16x256xf32>
      %c0_18 = arith.constant 0 : index
      %c0_19 = arith.constant 0 : index
      %75 = vector.load %arg8[%c0_18, %c0_19] : memref<16x24xf32, #tpu.memory_space<vmem>>, vector<16x24xf32>
      %c0_20 = arith.constant 0 : index
      %c0_21 = arith.constant 0 : index
      %76 = vector.load %arg10[%c0_20, %c0_21] : memref<24x256xf32, #tpu.memory_space<vmem>>, vector<24x256xf32>
      %cst_22 = arith.constant dense<0.000000e+00> : vector<16x256xf32>
      %77 = tpu.matmul %75, %76, %cst_22 {dimension_numbers = #tpu.dot_dimension_numbers<[1], [0], [0], [1], [0, 0, 1, 1], [], []>} : vector<16x24xf32>, vector<24x256xf32>, vector<16x256xf32> -> vector<16x256xf32>
      %c0_23 = arith.constant 0 : index
      %c0_24 = arith.constant 0 : index
      %78 = vector.load %arg9[%c0_23, %c0_24] : memref<3x256xf32, #tpu.memory_space<vmem>>, vector<3x256xf32>
      %cst_25 = arith.constant dense<0.000000e+00> : vector<8x256xf32>
      %79 = tpu.matmul %16, %78, %cst_25 {dimension_numbers = #tpu.dot_dimension_numbers<[1], [0], [0], [1], [0, 0, 1, 1], [], []>} : vector<8x3xf32>, vector<3x256xf32>, vector<8x256xf32> -> vector<8x256xf32>
      %c0_26 = arith.constant 0 : index
      %c0_27 = arith.constant 0 : index
      %80 = vector.load %arg11[%c0_26, %c0_27] : memref<1x256xf32, #tpu.memory_space<vmem>>, vector<1x256xf32>
      %81 = vector.broadcast %80 : vector<1x256xf32> to vector<8x256xf32>
      %82 = arith.subf %79, %81 : vector<8x256xf32>
      %83 = vector.shape_cast %77 : vector<16x256xf32> to vector<1x16x256xf32>
      %84 = vector.shape_cast %82 : vector<8x256xf32> to vector<8x1x256xf32>
      %85 = vector.broadcast %83 : vector<1x16x256xf32> to vector<8x16x256xf32>
      %86 = vector.broadcast %84 : vector<8x1x256xf32> to vector<8x16x256xf32>
      %87 = arith.subf %85, %86 : vector<8x16x256xf32>
      %cst_28 = arith.constant 0.000000e+00 : f32
      %88 = vector.broadcast %cst_28 : f32 to vector<8x16x256xf32>
      %89 = arith.maximumf %87, %88 : vector<8x16x256xf32>
      %90 = arith.truncf %89 : vector<8x16x256xf32> to vector<8x16x256xbf16>
      %91 = vector.shape_cast %90 : vector<8x16x256xbf16> to vector<128x256xbf16>
      %c0_29 = arith.constant 0 : index
      %c0_30 = arith.constant 0 : index
      %92 = vector.load %arg12[%c0_29, %c0_30] : memref<256x256xbf16, #tpu.memory_space<vmem>>, vector<256x256xbf16>
      %cst_31 = arith.constant dense<0.000000e+00> : vector<128x256xf32>
      %93 = tpu.matmul %91, %92, %cst_31 {dimension_numbers = #tpu.dot_dimension_numbers<[1], [0], [0], [1], [0, 0, 1, 1], [], []>} : vector<128x256xbf16>, vector<256x256xbf16>, vector<128x256xf32> -> vector<128x256xf32>
      %94 = vector.shape_cast %93 : vector<128x256xf32> to vector<8x16x256xf32>
      %95 = arith.addf %94, %74 : vector<8x16x256xf32>
      %cst_32 = arith.constant dense<0xFF800000> : vector<8x256xf32>
      %96 = vector.multi_reduction <maximumf>, %95, %cst_32 [1] : vector<8x16x256xf32> to vector<8x256xf32>
      %97 = vector.extract_strided_slice %96 {offsets = [0, 0], sizes = [8, 32], strides = [1, 1]} : vector<8x256xf32> to vector<8x32xf32>
      %98 = vector.extract_strided_slice %96 {offsets = [0, 32], sizes = [8, 32], strides = [1, 1]} : vector<8x256xf32> to vector<8x32xf32>
      %99 = arith.maximumf %97, %98 : vector<8x32xf32>
      %100 = vector.extract_strided_slice %96 {offsets = [0, 64], sizes = [8, 32], strides = [1, 1]} : vector<8x256xf32> to vector<8x32xf32>
      %101 = arith.maximumf %99, %100 : vector<8x32xf32>
      %102 = vector.extract_strided_slice %96 {offsets = [0, 96], sizes = [8, 32], strides = [1, 1]} : vector<8x256xf32> to vector<8x32xf32>
      %103 = arith.maximumf %101, %102 : vector<8x32xf32>
      %104 = vector.extract_strided_slice %96 {offsets = [0, 128], sizes = [8, 32], strides = [1, 1]} : vector<8x256xf32> to vector<8x32xf32>
      %105 = arith.maximumf %103, %104 : vector<8x32xf32>
      %106 = vector.extract_strided_slice %96 {offsets = [0, 160], sizes = [8, 32], strides = [1, 1]} : vector<8x256xf32> to vector<8x32xf32>
      %107 = arith.maximumf %105, %106 : vector<8x32xf32>
      %108 = vector.extract_strided_slice %96 {offsets = [0, 192], sizes = [8, 32], strides = [1, 1]} : vector<8x256xf32> to vector<8x32xf32>
      %109 = arith.maximumf %107, %108 : vector<8x32xf32>
      %110 = vector.extract_strided_slice %96 {offsets = [0, 224], sizes = [8, 32], strides = [1, 1]} : vector<8x256xf32> to vector<8x32xf32>
      %111 = arith.maximumf %109, %110 : vector<8x32xf32>
      %c0_33 = arith.constant 0 : index
      %c0_34 = arith.constant 0 : index
      %112 = vector.load %arg13[%c0_33, %c0_34] : memref<8x32xf32, #tpu.memory_space<vmem>>, vector<8x32xf32>
      %113 = arith.maximumf %112, %111 : vector<8x32xf32>
      %c0_35 = arith.constant 0 : index
      %c0_36 = arith.constant 0 : index
      %114 = vector.load %arg13[%c0_35, %c0_36] : memref<8x32xf32, #tpu.memory_space<vmem>>, vector<8x32xf32>
      tpu.vector_store %arg13[%c0_35, %c0_36], %113 {strides = array<i32>} : memref<8x32xf32, #tpu.memory_space<vmem>>, vector<8x32xf32>,
    } else {
    }
    return
  }
  func.func @transform_0(%arg0: i32, %arg1: i32, %arg2: memref<2x2xi32, #tpu.memory_space<smem>>, %arg3: memref<1x2xi32, #tpu.memory_space<smem>>) -> (i32, i32) {
    %c0_i32 = arith.constant 0 : i32
    %c0_i32_0 = arith.constant 0 : i32
    return %arg0, %c0_i32 : i32, i32
  }
  func.func @transform_1(%arg0: i32, %arg1: i32, %arg2: memref<2x2xi32, #tpu.memory_space<smem>>, %arg3: memref<1x2xi32, #tpu.memory_space<smem>>) -> (i32, i32) {
    %c0_i32 = arith.constant 0 : i32
    %c0_i32_0 = arith.constant 0 : i32
    return %arg0, %c0_i32 : i32, i32
  }
  func.func @transform_2(%arg0: i32, %arg1: i32, %arg2: memref<2x2xi32, #tpu.memory_space<smem>>, %arg3: memref<1x2xi32, #tpu.memory_space<smem>>) -> (i32, i32) {
    %c0_i32 = arith.constant 0 : i32
    %c0_i32_0 = arith.constant 0 : i32
    return %c0_i32, %arg1 : i32, i32
  }
  func.func @transform_3(%arg0: i32, %arg1: i32, %arg2: memref<2x2xi32, #tpu.memory_space<smem>>, %arg3: memref<1x2xi32, #tpu.memory_space<smem>>) -> (i32, i32) {
    %c0_i32 = arith.constant 0 : i32
    %c0_i32_0 = arith.constant 0 : i32
    return %c0_i32, %arg1 : i32, i32
  }
  func.func @transform_4(%arg0: i32, %arg1: i32, %arg2: memref<2x2xi32, #tpu.memory_space<smem>>, %arg3: memref<1x2xi32, #tpu.memory_space<smem>>) -> (i32, i32) {
    %c0_i32 = arith.constant 0 : i32
    %c0_i32_0 = arith.constant 0 : i32
    return %arg1, %c0_i32 : i32, i32
  }
  func.func @transform_5(%arg0: i32, %arg1: i32, %arg2: memref<2x2xi32, #tpu.memory_space<smem>>, %arg3: memref<1x2xi32, #tpu.memory_space<smem>>) -> (i32, i32) {
    %c0_i32 = arith.constant 0 : i32
    %c0_i32_0 = arith.constant 0 : i32
    %c0_i32_1 = arith.constant 0 : i32
    return %c0_i32, %c0_i32_0 : i32, i32
  }
  func.func @transform_6(%arg0: i32, %arg1: i32, %arg2: memref<2x2xi32, #tpu.memory_space<smem>>, %arg3: memref<1x2xi32, #tpu.memory_space<smem>>) -> (i32, i32) {
    %c0_i32 = arith.constant 0 : i32
    %c0_i32_0 = arith.constant 0 : i32
    %c0_i32_1 = arith.constant 0 : i32
    return %c0_i32, %c0_i32_0 : i32, i32
  }
  func.func @transform_7(%arg0: i32, %arg1: i32, %arg2: memref<2x2xi32, #tpu.memory_space<smem>>, %arg3: memref<1x2xi32, #tpu.memory_space<smem>>) -> (i32, i32) {
    %c0_i32 = arith.constant 0 : i32
    %c0_i32_0 = arith.constant 0 : i32
    %c0_i32_1 = arith.constant 0 : i32
    return %c0_i32, %c0_i32_0 : i32, i32
  }
  func.func @transform_8(%arg0: i32, %arg1: i32, %arg2: memref<2x2xi32, #tpu.memory_space<smem>>, %arg3: memref<1x2xi32, #tpu.memory_space<smem>>) -> (i32, i32) {
    %c0_i32 = arith.constant 0 : i32
    %c0_i32_0 = arith.constant 0 : i32
    %c0_i32_1 = arith.constant 0 : i32
    return %c0_i32, %c0_i32_0 : i32, i32
  }
  func.func @transform_9(%arg0: i32, %arg1: i32, %arg2: memref<2x2xi32, #tpu.memory_space<smem>>, %arg3: memref<1x2xi32, #tpu.memory_space<smem>>) -> (i32, i32) {
    %c0_i32 = arith.constant 0 : i32
    %c0_i32_0 = arith.constant 0 : i32
    return %arg0, %c0_i32 : i32, i32
  }
}

</mosaic_0001>

<llo_original>
// kernel: tpu_custom_call.1
$region0: #{tpu_custom_call.1}
  #allocation0 [shape = 'u32[]', space=smem, size = 0x4, offset = 0x4, fixed_abs, tag = 'smem constant byte address 0x4 - core index']
  #allocation1 [shape = 'u32[144,128]{1,0:T(1,128)}', space=vmem, size = 0x12000, scoped, tag = 'internal scratch']
  #allocation2 [shape = 's32[1]{0}', space=sflag, size = 0x4, scoped, tag = 'scoped memory for tpu_custom_call.1']
  #allocation3 [shape = 'u8[1024]{0}', space=smem, size = 0x400, scoped, tag = 'prefetched SMEM operand 0']
  #allocation4 [shape = 'u8[512]{0}', space=smem, size = 0x200, scoped, tag = 'prefetched SMEM operand 1']
  %s0 = inlined_call_operand.vmem [shape: s32[2,2], index: 0, kind: input, shape index: {}]
  %s1 = inlined_call_operand.vmem [shape: s32[1,2], index: 1, kind: input, shape index: {}]
  %s2 = inlined_call_operand.vmem [shape: f32[16,3], index: 2, kind: input, shape index: {}]
  %s3 = inlined_call_operand.vmem [shape: s32[16,1], index: 3, kind: input, shape index: {}]
  %s4 = inlined_call_operand.hbm [shape: f32[3,128], index: 4, kind: input, shape index: {}]
  %s5 = inlined_call_operand.hbm [shape: s32[1,128], index: 5, kind: input, shape index: {}]
  %s6 = inlined_call_operand.hbm [shape: f32[16,24], index: 6, kind: input, shape index: {}]
  %s7 = inlined_call_operand.hbm [shape: f32[3,256], index: 7, kind: input, shape index: {}]
  %s8 = inlined_call_operand.vmem [shape: f32[24,256], index: 8, kind: input, shape index: {}]
  %s9 = inlined_call_operand.vmem [shape: f32[1,256], index: 9, kind: input, shape index: {}]
  %s10 = inlined_call_operand.hbm [shape: bf16[256,256], index: 10, kind: input, shape index: {}]
  %s11 = inlined_call_operand.hbm [shape: f32[16,32], index: 11, kind: output, shape index: {}]
  %s12 = sld [smem:[#allocation0]]
  $region97: #{tpu_custom_call.1} parent=0
    _
  %s14 = ssub.s32 1, %s12
  %s15 = scalar_select 0, %s14, %s12
  %s16 = sshll.u32 %s0, 4
  %s17 = int_to_ptr.vmem [resolvable:$true] %s16
  %19 = dma.vmem_to_smem %s17, 32, [#allocation3], [#allocation2]
  %s20 = sshll.u32 %s1, 4
  %s21 = int_to_ptr.vmem [resolvable:$true] %s20
  %23 = dma.vmem_to_smem %s21, 16, [#allocation4], [#allocation2]
  %24 = dma.done [#allocation2], 48
  %25 = sfence
  $region1: #{tpu_custom_call.1} parent=0
    #allocation5 [shape = 'u8[2048]{0}', space=vmem, size = 0x800, scoped, tag = 'input window, operand 4, single buffered']
    #allocation6 [shape = 's32[2]{0}', space=sflag, size = 0x8, scoped, tag = 'scoped memory for tpu_custom_call.1']
    #allocation7 [shape = 's32[2]{0}', space=sflag, size = 0x8, scoped, tag = 'scoped memory for tpu_custom_call.1']
    #allocation8 [shape = 'u8[512]{0}', space=vmem, size = 0x400, scoped, tag = 'input window, operand 5, single buffered']
    #allocation9 [shape = 's32[1]{0}', space=sflag, size = 0x4, scoped, tag = 'scoped memory for tpu_custom_call.1']
    #allocation10 [shape = 'u8[8192]{0}', space=vmem, size = 0x2000, scoped, tag = 'input window, operand 6, single buffered']
    #allocation11 [shape = 'u8[4096]{0}', space=vmem, size = 0x1000, scoped, tag = 'input window, operand 7, single buffered']
    #allocation12 [shape = 's32[1]{0}', space=sflag, size = 0x4, scoped, tag = 'scoped memory for tpu_custom_call.1']
    #allocation13 [shape = 'u8[131072]{0}', space=vmem, size = 0x20000, scoped, tag = 'input window, operand 10, single buffered']
    #allocation14 [shape = 'u8[8192]{0}', space=vmem, size = 0x2000, scoped, tag = 'output window, operand 0']
    %26 = vsyncpa [#allocation6], 0
    %27 = vsyncpa [#allocation9], 0
    %28 = vsyncpa [#allocation12], 0
    %29 = vsyncpa [#allocation7], 0
    %s30 = scalar_lea.sflag [#allocation7], 1
    %31 = vsyncpa %s30, 0
    loop: start=0, step=1, limit=4
    $region2: #{tpu_custom_call.1} parent=1 // loop_pre_header
      _
    $region3: #{tpu_custom_call.1} parent=1 // loop_header
      %s33 = sphi 0, %s37
      %p34 = scmp.ge.s32.totalorder %s33, 4
      %s40 = sphi 0, %s52
      %s41 = sphi 0, %s48
      %s42 = sphi 0, %s40
      %s43 = sphi 0, %s41
      %s44 = sphi 0, %s42
      %s45 = sphi 0, %s43
      %s55 = sphi 0, %s57
      %s58 = sphi 0, %s55
      %s59 = sphi 0, %s58
      %s75 = sphi 0, %s59
      %s81 = sphi 0, %s83
      %s84 = sphi 0, %s81
      %s85 = sphi 0, %s84
      %s101 = sphi 0, %s85
      %s107 = sphi 0, %s109
      %s110 = sphi 0, %s107
      %s111 = sphi 0, %s110
      %s127 = sphi 0, %s111
      %s133 = sphi 0, %s135
      %s136 = sphi 0, %s133
      %s137 = sphi 0, %s136
      %s153 = sphi 0, %s137
      %s159 = sphi 0, %s161
      %s162 = sphi 0, %s159
      %s163 = sphi 0, %s162
      %s179 = sphi 0, %s163
      %s183 = sphi 0, %s183
      %s185 = sphi 0, %s183
      %s186 = sphi 0, %s185
      %s200 = sphi 0, %s186
      %s204 = sphi 0, %s204
      %s206 = sphi 0, %s204
      %s207 = sphi 0, %s206
      %s221 = sphi 0, %s207
      %s225 = sphi 0, %s225
      %s227 = sphi 0, %s225
      %s228 = sphi 0, %s227
      %s242 = sphi 0, %s228
      %s246 = sphi 0, %s246
      %s248 = sphi 0, %s246
      %s249 = sphi 0, %s248
      %s263 = sphi 0, %s249
      %s269 = sphi 0, %s271
      %s272 = sphi 0, %s269
      %s273 = sphi 0, %s272
      %s289 = sphi 0, %s273
    $region4: #{tpu_custom_call.1} parent=1 // loop_header_branch
      %36 = sbr.rel (%p34) target = $region8
    $region5: #{tpu_custom_call.1} parent=1 // loop_body
      %s38 = ssub.s32 %s33, 1
      %s39 = ssub.s32 %s33, 2
      %s46 = sadd.s32 1, %s41
      %p47 = scmp.ge.s32.totalorder %s46, 1
      %s48 = scalar_select %p47, 0, %s46
      %s49 = sadd.s32 1, %s40
      %s50 = scalar_select %p47, %s49, %s40
      %p51 = scmp.ge.s32.totalorder %s50, 2
      %s52 = scalar_select %p51, 0, %s50
      %s53 = ssub.s32 %s40, %s52
      %p54 = scmp.eq.s32.totalorder %s53, 0
      %s56 = sadd.s32 %s55, 1
      %s57 = scalar_select %p54, %s55, %s56
      %p60 = pneg %p54
      %p61 = scmp.eq.s32.totalorder %s33, 1
      %p62 = por %p60, %p61
      %p63 = scmp.ne.s32.totalorder %s55, %s58
      %p64 = scmp.eq.s32.totalorder %s33, 0
      %p65 = por %p63, %p64
      %p66 = scmp.ne.s32.totalorder %s55, %s58
      %p67 = scmp.eq.s32.totalorder %s38, 1
      %p68 = por %p66, %p67
      %p69 = scmp.ne.s32.totalorder %s58, %s59
      %p70 = scmp.eq.s32.totalorder %s38, 0
      %p71 = por %p69, %p70
      %p72 = scmp.ne.s32.totalorder %s58, %s59
      %p73 = scmp.eq.s32.totalorder %s39, 1
      %p74 = por %p72, %p73
      %p76 = scmp.ne.s32.totalorder %s59, %s75
      %p77 = scmp.eq.s32.totalorder %s39, 0
      %p78 = por %p76, %p77
      %s79 = ssub.s32 %s40, %s52
      %p80 = scmp.eq.s32.totalorder %s79, 0
      %s82 = sadd.s32 %s81, 1
      %s83 = scalar_select %p80, %s81, %s82
      %p86 = pneg %p80
      %p87 = scmp.eq.s32.totalorder %s33, 1
      %p88 = por %p86, %p87
      %p89 = scmp.ne.s32.totalorder %s81, %s84
      %p90 = scmp.eq.s32.totalorder %s33, 0
      %p91 = por %p89, %p90
      %p92 = scmp.ne.s32.totalorder %s81, %s84
      %p93 = scmp.eq.s32.totalorder %s38, 1
      %p94 = por %p92, %p93
      %p95 = scmp.ne.s32.totalorder %s84, %s85
      %p96 = scmp.eq.s32.totalorder %s38, 0
      %p97 = por %p95, %p96
      %p98 = scmp.ne.s32.totalorder %s84, %s85
      %p99 = scmp.eq.s32.totalorder %s39, 1
      %p100 = por %p98, %p99
      %p102 = scmp.ne.s32.totalorder %s85, %s101
      %p103 = scmp.eq.s32.totalorder %s39, 0
      %p104 = por %p102, %p103
      %s105 = ssub.s32 %s41, %s48
      %p106 = scmp.eq.s32.totalorder %s105, 0
      %s108 = sadd.s32 %s107, 1
      %s109 = scalar_select %p106, %s107, %s108
      %p112 = pneg %p106
      %p113 = scmp.eq.s32.totalorder %s33, 1
      %p114 = por %p112, %p113
      %p115 = scmp.ne.s32.totalorder %s107, %s110
      %p116 = scmp.eq.s32.totalorder %s33, 0
      %p117 = por %p115, %p116
      %p118 = scmp.ne.s32.totalorder %s107, %s110
      %p119 = scmp.eq.s32.totalorder %s38, 1
      %p120 = por %p118, %p119
      %p121 = scmp.ne.s32.totalorder %s110, %s111
      %p122 = scmp.eq.s32.totalorder %s38, 0
      %p123 = por %p121, %p122
      %p124 = scmp.ne.s32.totalorder %s110, %s111
      %p125 = scmp.eq.s32.totalorder %s39, 1
      %p126 = por %p124, %p125
      %p128 = scmp.ne.s32.totalorder %s111, %s127
      %p129 = scmp.eq.s32.totalorder %s39, 0
      %p130 = por %p128, %p129
      %s131 = ssub.s32 %s41, %s48
      %p132 = scmp.eq.s32.totalorder %s131, 0
      %s134 = sadd.s32 %s133, 1
      %s135 = scalar_select %p132, %s133, %s134
      %p138 = pneg %p132
      %p139 = scmp.eq.s32.totalorder %s33, 1
      %p140 = por %p138, %p139
      %p141 = scmp.ne.s32.totalorder %s133, %s136
      %p142 = scmp.eq.s32.totalorder %s33, 0
      %p143 = por %p141, %p142
      %p144 = scmp.ne.s32.totalorder %s133, %s136
      %p145 = scmp.eq.s32.totalorder %s38, 1
      %p146 = por %p144, %p145
      %p147 = scmp.ne.s32.totalorder %s136, %s137
      %p148 = scmp.eq.s32.totalorder %s38, 0
      %p149 = por %p147, %p148
      %p150 = scmp.ne.s32.totalorder %s136, %s137
      %p151 = scmp.eq.s32.totalorder %s39, 1
      %p152 = por %p150, %p151
      %p154 = scmp.ne.s32.totalorder %s137, %s153
      %p155 = scmp.eq.s32.totalorder %s39, 0
      %p156 = por %p154, %p155
      %s157 = ssub.s32 %s41, %s48
      %p158 = scmp.eq.s32.totalorder %s157, 0
      %s160 = sadd.s32 %s159, 1
      %s161 = scalar_select %p158, %s159, %s160
      %p164 = pneg %p158
      %p165 = scmp.eq.s32.totalorder %s33, 1
      %p166 = por %p164, %p165
      %p167 = scmp.ne.s32.totalorder %s159, %s162
      %p168 = scmp.eq.s32.totalorder %s33, 0
      %p169 = por %p167, %p168
      %p170 = scmp.ne.s32.totalorder %s159, %s162
      %p171 = scmp.eq.s32.totalorder %s38, 1
      %p172 = por %p170, %p171
      %p173 = scmp.ne.s32.totalorder %s162, %s163
      %p174 = scmp.eq.s32.totalorder %s38, 0
      %p175 = por %p173, %p174
      %p176 = scmp.ne.s32.totalorder %s162, %s163
      %p177 = scmp.eq.s32.totalorder %s39, 1
      %p178 = por %p176, %p177
      %p180 = scmp.ne.s32.totalorder %s163, %s179
      %p181 = scmp.eq.s32.totalorder %s39, 0
      %p182 = por %p180, %p181
      %s184 = sadd.s32 %s183, 1
      %p187 = scmp.eq.s32.totalorder %s33, 1
      %p188 = scmp.ne.s32.totalorder %s183, %s185
      %p189 = scmp.eq.s32.totalorder %s33, 0
      %p190 = por %p188, %p189
      %p191 = scmp.ne.s32.totalorder %s183, %s185
      %p192 = scmp.eq.s32.totalorder %s38, 1
      %p193 = por %p191, %p192
      %p194 = scmp.ne.s32.totalorder %s185, %s186
      %p195 = scmp.eq.s32.totalorder %s38, 0
      %p196 = por %p194, %p195
      %p197 = scmp.ne.s32.totalorder %s185, %s186
      %p198 = scmp.eq.s32.totalorder %s39, 1
      %p199 = por %p197, %p198
      %p201 = scmp.ne.s32.totalorder %s186, %s200
      %p202 = scmp.eq.s32.totalorder %s39, 0
      %p203 = por %p201, %p202
      %s205 = sadd.s32 %s204, 1
      %p208 = scmp.eq.s32.totalorder %s33, 1
      %p209 = scmp.ne.s32.totalorder %s204, %s206
      %p210 = scmp.eq.s32.totalorder %s33, 0
      %p211 = por %p209, %p210
      %p212 = scmp.ne.s32.totalorder %s204, %s206
      %p213 = scmp.eq.s32.totalorder %s38, 1
      %p214 = por %p212, %p213
      %p215 = scmp.ne.s32.totalorder %s206, %s207
      %p216 = scmp.eq.s32.totalorder %s38, 0
      %p217 = por %p215, %p216
      %p218 = scmp.ne.s32.totalorder %s206, %s207
      %p219 = scmp.eq.s32.totalorder %s39, 1
      %p220 = por %p218, %p219
      %p222 = scmp.ne.s32.totalorder %s207, %s221
      %p223 = scmp.eq.s32.totalorder %s39, 0
      %p224 = por %p222, %p223
      %s226 = sadd.s32 %s225, 1
      %p229 = scmp.eq.s32.totalorder %s33, 1
      %p230 = scmp.ne.s32.totalorder %s225, %s227
      %p231 = scmp.eq.s32.totalorder %s33, 0
      %p232 = por %p230, %p231
      %p233 = scmp.ne.s32.totalorder %s225, %s227
      %p234 = scmp.eq.s32.totalorder %s38, 1
      %p235 = por %p233, %p234
      %p236 = scmp.ne.s32.totalorder %s227, %s228
      %p237 = scmp.eq.s32.totalorder %s38, 0
      %p238 = por %p236, %p237
      %p239 = scmp.ne.s32.totalorder %s227, %s228
      %p240 = scmp.eq.s32.totalorder %s39, 1
      %p241 = por %p239, %p240
      %p243 = scmp.ne.s32.totalorder %s228, %s242
      %p244 = scmp.eq.s32.totalorder %s39, 0
      %p245 = por %p243, %p244
      %s247 = sadd.s32 %s246, 1
      %p250 = scmp.eq.s32.totalorder %s33, 1
      %p251 = scmp.ne.s32.totalorder %s246, %s248
      %p252 = scmp.eq.s32.totalorder %s33, 0
      %p253 = por %p251, %p252
      %p254 = scmp.ne.s32.totalorder %s246, %s248
      %p255 = scmp.eq.s32.totalorder %s38, 1
      %p256 = por %p254, %p255
      %p257 = scmp.ne.s32.totalorder %s248, %s249
      %p258 = scmp.eq.s32.totalorder %s38, 0
      %p259 = por %p257, %p258
      %p260 = scmp.ne.s32.totalorder %s248, %s249
      %p261 = scmp.eq.s32.totalorder %s39, 1
      %p262 = por %p260, %p261
      %p264 = scmp.ne.s32.totalorder %s249, %s263
      %p265 = scmp.eq.s32.totalorder %s39, 0
      %p266 = por %p264, %p265
      %s267 = ssub.s32 %s40, %s52
      %p268 = scmp.eq.s32.totalorder %s267, 0
      %s270 = sadd.s32 %s269, 1
      %s271 = scalar_select %p268, %s269, %s270
      %p274 = pneg %p268
      %p275 = scmp.eq.s32.totalorder %s33, 1
      %p276 = por %p274, %p275
      %p277 = scmp.ne.s32.totalorder %s269, %s272
      %p278 = scmp.eq.s32.totalorder %s33, 0
      %p279 = por %p277, %p278
      %p280 = scmp.ne.s32.totalorder %s269, %s272
      %p281 = scmp.eq.s32.totalorder %s38, 1
      %p282 = por %p280, %p281
      %p283 = scmp.ne.s32.totalorder %s272, %s273
      %p284 = scmp.eq.s32.totalorder %s38, 0
      %p285 = por %p283, %p284
      %p286 = scmp.ne.s32.totalorder %s272, %s273
      %p287 = scmp.eq.s32.totalorder %s39, 1
      %p288 = por %p286, %p287
      %p290 = scmp.ne.s32.totalorder %s273, %s289
      %p291 = scmp.eq.s32.totalorder %s39, 0
      %p292 = por %p290, %p291
      %p293 = scmp.le.s32.totalorder 1, %s33
      %p294 = scmp.lt.s32.totalorder %s33, 3
      %p295 = pnand %p293, %p294
      %p296 = pneg %p295
      // Predicated region
      $region9: #{tpu_custom_call.1} parent=5 // pred_check
        _
      $region10: #{tpu_custom_call.1} parent=5 // pred_check_branch
        %298 = sbr.rel (%p295) target = $region12
      $region11: #{tpu_custom_call.1} parent=5 // pred_region
        %s299 = ssub.s32 %s33, 1
        // Predicated region
        $region13: #{tpu_custom_call.1} parent=11 // pred_check
          %p300 = pneg %p123
        $region14: #{tpu_custom_call.1} parent=11 // pred_check_branch
          %302 = sbr.rel (%p300) target = $region16
        $region15: #{tpu_custom_call.1} parent=11 // pred_region
          %s304 = ssub.s32 64, 64
          %305 = vsyncadd [#allocation6], %s304
          %s306 = smul.addr %s43, 64
          %s307 = scalar_lea.hbm %s4, %s306
          %s309 = sshll.u32 [#allocation5], 4
          %s310 = int_to_ptr.vmem [resolvable:$true] %s309
          %312 = dma.hbm_to_vmem [thread:$0]  %s307, 64, %s310, [#allocation6]
        $region16: #{tpu_custom_call.1} parent=11 // pred_fallthru
          _
        // Predicated region
        $region17: #{tpu_custom_call.1} parent=11 // pred_check
          %p313 = pneg %p149
        $region18: #{tpu_custom_call.1} parent=11 // pred_check_branch
          %315 = sbr.rel (%p313) target = $region20
        $region19: #{tpu_custom_call.1} parent=11 // pred_region
          %s317 = ssub.s32 16, 16
          %318 = vsyncadd [#allocation9], %s317
          %s319 = smul.addr %s43, 16
          %s320 = scalar_lea.hbm %s5, %s319
          %s322 = sshll.u32 [#allocation8], 4
          %s323 = int_to_ptr.vmem [resolvable:$true] %s322
          %325 = dma.hbm_to_vmem [thread:$0]  %s320, 16, %s323, [#allocation9]
        $region20: #{tpu_custom_call.1} parent=11 // pred_fallthru
          _
        // Predicated region
        $region21: #{tpu_custom_call.1} parent=11 // pred_check
          %p326 = pneg %p175
        $region22: #{tpu_custom_call.1} parent=11 // pred_check_branch
          %328 = sbr.rel (%p326) target = $region24
        $region23: #{tpu_custom_call.1} parent=11 // pred_region
          %s329 = smul.u32 2, %s43
          %s331 = ssub.s32 256, 256
          %332 = vsyncadd [#allocation9], %s331
          %s333 = smul.addr %s329, 128
          %s334 = scalar_lea.hbm %s6, %s333
          %s335 = sshll.u32 [#allocation10], 4
          %s336 = int_to_ptr.vmem [resolvable:$true] %s335
          %341 = dma.hbm_to_vmem [thread:$0]  %s334, 256, %s336, [#allocation9], 128, 128, 8
        $region24: #{tpu_custom_call.1} parent=11 // pred_fallthru
          _
        // Predicated region
        $region25: #{tpu_custom_call.1} parent=11 // pred_check
          %p342 = pneg %p196
        $region26: #{tpu_custom_call.1} parent=11 // pred_check_branch
          %344 = sbr.rel (%p342) target = $region28
        $region27: #{tpu_custom_call.1} parent=11 // pred_region
          %s346 = ssub.s32 128, 128
          %347 = vsyncadd [#allocation12], %s346
          %s349 = sshll.u32 [#allocation11], 4
          %s350 = int_to_ptr.vmem [resolvable:$true] %s349
          %352 = dma.hbm_to_vmem [thread:$0]  %s7, 128, %s350, [#allocation12]
        $region28: #{tpu_custom_call.1} parent=11 // pred_fallthru
          _
        // Predicated region
        $region29: #{tpu_custom_call.1} parent=11 // pred_check
          %p353 = pneg %p217
        $region30: #{tpu_custom_call.1} parent=11 // pred_check_branch
          %355 = sbr.rel (%p353) target = $region32
        $region31: #{tpu_custom_call.1} parent=11 // pred_region
          _
        $region32: #{tpu_custom_call.1} parent=11 // pred_fallthru
          _
        // Predicated region
        $region33: #{tpu_custom_call.1} parent=11 // pred_check
          %p356 = pneg %p238
        $region34: #{tpu_custom_call.1} parent=11 // pred_check_branch
          %358 = sbr.rel (%p356) target = $region36
        $region35: #{tpu_custom_call.1} parent=11 // pred_region
          _
        $region36: #{tpu_custom_call.1} parent=11 // pred_fallthru
          _
        // Predicated region
        $region37: #{tpu_custom_call.1} parent=11 // pred_check
          %p359 = pneg %p259
        $region38: #{tpu_custom_call.1} parent=11 // pred_check_branch
          %361 = sbr.rel (%p359) target = $region40
        $region39: #{tpu_custom_call.1} parent=11 // pred_region
          %s363 = ssub.s32 4096, 4096
          %364 = vsyncadd [#allocation12], %s363
          %s365 = sshll.u32 [#allocation13], 4
          %s366 = int_to_ptr.vmem [resolvable:$true] %s365
          %371 = dma.hbm_to_vmem [thread:$0]  %s10, 4096, %s366, [#allocation12], 128, 128, 8
        $region40: #{tpu_custom_call.1} parent=11 // pred_fallthru
          _
      $region12: #{tpu_custom_call.1} parent=5 // pred_fallthru
        _
      %p372 = scmp.lt.s32.totalorder %s33, 2
      // Predicated region
      $region41: #{tpu_custom_call.1} parent=5 // pred_check
        %p373 = pneg %p372
      $region42: #{tpu_custom_call.1} parent=5 // pred_check_branch
        %375 = sbr.rel (%p373) target = $region44
      $region43: #{tpu_custom_call.1} parent=5 // pred_region
        // Predicated region
        $region45: #{tpu_custom_call.1} parent=43 // pred_check
          %p376 = pneg %p65
        $region46: #{tpu_custom_call.1} parent=43 // pred_check_branch
          %378 = sbr.rel (%p376) target = $region48
        $region47: #{tpu_custom_call.1} parent=43 // pred_region
          %p379 = scmp.lt.s32.totalorder %s40, 1
          %s380 = scalar_select %p379, %s40, 1
          %s381 = smul.addr %s380, 8
          %s382 = scalar_lea.vmem %s2, %s381
        $region48: #{tpu_custom_call.1} parent=43 // pred_fallthru
          _
        // Predicated region
        $region49: #{tpu_custom_call.1} parent=43 // pred_check
          %p383 = pneg %p91
        $region50: #{tpu_custom_call.1} parent=43 // pred_check_branch
          %385 = sbr.rel (%p383) target = $region52
        $region51: #{tpu_custom_call.1} parent=43 // pred_region
          %p386 = scmp.lt.s32.totalorder %s40, 1
          %s387 = scalar_select %p386, %s40, 1
          %s388 = smul.addr %s387, 8
          %s389 = scalar_lea.vmem %s3, %s388
        $region52: #{tpu_custom_call.1} parent=43 // pred_fallthru
          _
      $region44: #{tpu_custom_call.1} parent=5 // pred_fallthru
        _
      %p390 = scmp.le.s32.totalorder 1, %s33
      %p391 = scmp.lt.s32.totalorder %s33, 3
      %p392 = pnand %p390, %p391
      %p393 = pneg %p392
      // Predicated region
      $region53: #{tpu_custom_call.1} parent=5 // pred_check
        _
      $region54: #{tpu_custom_call.1} parent=5 // pred_check_branch
        %395 = sbr.rel (%p392) target = $region56
      $region55: #{tpu_custom_call.1} parent=5 // pred_region
        %s396 = ssub.s32 %s33, 1
        // Predicated region
        $region57: #{tpu_custom_call.1} parent=55 // pred_check
          %p397 = pneg %p123
        $region58: #{tpu_custom_call.1} parent=55 // pred_check_branch
          %399 = sbr.rel (%p397) target = $region60
        $region59: #{tpu_custom_call.1} parent=55 // pred_region
          %400 = dma.done [#allocation6], 64
        $region60: #{tpu_custom_call.1} parent=55 // pred_fallthru
          _
        // Predicated region
        $region61: #{tpu_custom_call.1} parent=55 // pred_check
          %p401 = pneg %p149
        $region62: #{tpu_custom_call.1} parent=55 // pred_check_branch
          %403 = sbr.rel (%p401) target = $region64
        $region63: #{tpu_custom_call.1} parent=55 // pred_region
          %404 = dma.done [#allocation9], 16
        $region64: #{tpu_custom_call.1} parent=55 // pred_fallthru
          _
        // Predicated region
        $region65: #{tpu_custom_call.1} parent=55 // pred_check
          %p405 = pneg %p175
        $region66: #{tpu_custom_call.1} parent=55 // pred_check_branch
          %407 = sbr.rel (%p405) target = $region68
        $region67: #{tpu_custom_call.1} parent=55 // pred_region
          %408 = dma.done [#allocation9], 256
        $region68: #{tpu_custom_call.1} parent=55 // pred_fallthru
          _
        // Predicated region
        $region69: #{tpu_custom_call.1} parent=55 // pred_check
          %p409 = pneg %p196
        $region70: #{tpu_custom_call.1} parent=55 // pred_check_branch
          %411 = sbr.rel (%p409) target = $region72
        $region71: #{tpu_custom_call.1} parent=55 // pred_region
          %412 = dma.done [#allocation12], 128
        $region72: #{tpu_custom_call.1} parent=55 // pred_fallthru
          _
        // Predicated region
        $region73: #{tpu_custom_call.1} parent=55 // pred_check
          %p413 = pneg %p259
        $region74: #{tpu_custom_call.1} parent=55 // pred_check_branch
          %415 = sbr.rel (%p413) target = $region76
        $region75: #{tpu_custom_call.1} parent=55 // pred_region
          %416 = dma.done [#allocation12], 4096
        $region76: #{tpu_custom_call.1} parent=55 // pred_fallthru
          _
        %p417 = scmp.lt.s32.totalorder %s42, 1
        %s418 = scalar_select %p417, %s42, 1
        %s419 = smul.addr %s418, 8
        %s420 = scalar_lea.vmem %s2, %s419
        %p421 = pneg %p71
        %p422 = pneg %p68
        %p423 = scmp.lt.s32.totalorder %s42, 1
        %s424 = scalar_select %p423, %s42, 1
        %s425 = smul.addr %s424, 8
        %s426 = scalar_lea.vmem %s3, %s425
        %p427 = pneg %p97
        %p428 = pneg %p94
        %p429 = pneg %p123
        %p430 = pneg %p120
        %p431 = pneg %p149
        %p432 = pneg %p146
        %p433 = pneg %p175
        %p434 = pneg %p172
        %p435 = pneg %p196
        %p436 = pneg %p193
        %p437 = pneg %p217
        %p438 = pneg %p214
        %p439 = pneg %p238
        %p440 = pneg %p235
        %p441 = pneg %p259
        %p442 = pneg %p256
        %p443 = pneg %p285
        %p444 = pneg %p282
        %s445 = sand.u32 %s272, 1
        %s446 = scalar_lea.sflag [#allocation7], %s445
        %s447 = sand.u32 %s272, 1
        %s448 = smul.addr %s447, 8
        %s449 = scalar_lea.vmem [#allocation14], %s448
        %p450 = scmp.lt.s32.totalorder %s42, 1
        %s451 = scalar_select %p450, %s42, 1
        %s452 = smul.addr %s451, 8
        %s453 = scalar_lea.vmem %s2, %s452
        %p454 = scmp.lt.s32.totalorder %s42, 1
        %s455 = scalar_select %p454, %s42, 1
        %s456 = smul.addr %s455, 8
        %s457 = scalar_lea.vmem %s3, %s456
        %s458 = smul.u32 2, %s43
        %p459 = scmp.eq.s32.totalorder %s43, 0
        // Predicated region
        $region77: #{tpu_custom_call.1} parent=55 // pred_check
          %p460 = pneg %p459
        $region78: #{tpu_custom_call.1} parent=55 // pred_check_branch
          %462 = sbr.rel (%p460) target = $region80
        $region79: #{tpu_custom_call.1} parent=55 // pred_region
          %vm463 = vcmask 261120
          %464 = vst.msk [vmem:[%s449] sm:$0xff] %vm463, -1e+30
        $region80: #{tpu_custom_call.1} parent=55 // pred_fallthru
          _
        %s465 = smul.u32 %s42, 128
        %s466 = sld [smem:[#allocation3 + %s465]]
        %s467 = smul.u32 %s43, 128
        %s468 = sadd.s32 %s467, 1
        %s469 = sld [smem:[#allocation4 + %s468]]
        %p470 = scmp.le.s32.totalorder %s466, %s469
        %s471 = sld [smem:[#allocation4 + %s467]]
        %s472 = sadd.s32 %s465, 1
        %s473 = sld [smem:[#allocation3 + %s472]]
        %p474 = scmp.le.s32.totalorder %s471, %s473
        %p475 = pnand %p470, %p474
        %p476 = pneg %p475
        // Predicated region
        $region81: #{tpu_custom_call.1} parent=55 // pred_check
          _
        $region82: #{tpu_custom_call.1} parent=55 // pred_check_branch
          %478 = sbr.rel (%p475) target = $region84
        $region83: #{tpu_custom_call.1} parent=55 // pred_region
          %v479 = vld [vmem:[%s453] sm:$0xff]
          %v480 = vld [vmem:[#allocation5] sm:$0x7]
          %vm481 = vcmask 23552
          %v483 = vsel %vm481, %v479, 0
          %vm485 = vcmask 1042432
          %v487 = vsel %vm485, %v480, 0
          %489 = vmatprep.subr.mxu0 0.0
          %490 = vmatpush1.msra.mxu0 0.0
          %491 = vmatprep.subr.mxu0 0.0
          %492 = vmatpush1.msra.mxu0 0.0
          %493 = vmatprep.subr.mxu0 0.0
          %494 = vmatpush1.msra.mxu0 0.0
          %495 = vmatprep.subr.mxu0 0.0
          %496 = vmatpush1.msra.mxu0 0.0
          %497 = vmatprep.subr.mxu0 0.0
          %498 = vmatpush1.msra.mxu0 0.0
          %499 = vmatprep.subr.mxu0 0.0
          %500 = vmatpush1.msra.mxu0 0.0
          %501 = vmatprep.subr.mxu0 0.0
          %502 = vmatpush1.msra.mxu0 0.0
          %503 = vmatprep.subr.mxu0 0.0
          %504 = vmatpush1.msra.mxu0 0.0
          %505 = vmatprep.subr.mxu0 0.0
          %506 = vmatpush1.msra.mxu0 0.0
          %507 = vmatprep.subr.mxu0 0.0
          %508 = vmatpush1.msra.mxu0 0.0
          %509 = vmatprep.subr.mxu0 0.0
          %510 = vmatpush1.msra.mxu0 0.0
          %511 = vmatprep.subr.mxu0 0.0
          %512 = vmatpush1.msra.mxu0 0.0
          %513 = vmatprep.subr.mxu0 0.0
          %514 = vmatpush1.msra.mxu0 0.0
          %515 = vmatprep.subr.mxu0 0.0
          %516 = vmatpush1.msra.mxu0 0.0
          %517 = vmatprep.subr.mxu0 0.0
          %518 = vmatpush1.msra.mxu0 0.0
          %519 = vmatprep.subr.mxu0 0.0
          %520 = vmatpush1.msra.mxu0 %v487
          %521 = vmatprep.subr.mxu0 0.0
          %522 = vmatpush2.msra.mxu0 0.0
          %523 = vmatprep.subr.mxu0 0.0
          %524 = vmatpush2.msra.mxu0 0.0
          %525 = vmatprep.subr.mxu0 0.0
          %526 = vmatpush2.msra.mxu0 0.0
          %527 = vmatprep.subr.mxu0 0.0
          %528 = vmatpush2.msra.mxu0 0.0
          %529 = vmatprep.subr.mxu0 0.0
          %530 = vmatpush2.msra.mxu0 0.0
          %531 = vmatprep.subr.mxu0 0.0
          %532 = vmatpush2.msra.mxu0 0.0
          %533 = vmatprep.subr.mxu0 0.0
          %534 = vmatpush2.msra.mxu0 0.0
          %535 = vmatprep.subr.mxu0 0.0
          %536 = vmatpush2.msra.mxu0 0.0
          %537 = vmatprep.subr.mxu0 0.0
          %538 = vmatpush2.msra.mxu0 0.0
          %539 = vmatprep.subr.mxu0 0.0
          %540 = vmatpush2.msra.mxu0 0.0
          %541 = vmatprep.subr.mxu0 0.0
          %542 = vmatpush2.msra.mxu0 0.0
          %543 = vmatprep.subr.mxu0 0.0
          %544 = vmatpush2.msra.mxu0 0.0
          %545 = vmatprep.subr.mxu0 0.0
          %546 = vmatpush2.msra.mxu0 0.0
          %547 = vmatprep.subr.mxu0 0.0
          %548 = vmatpush2.msra.mxu0 0.0
          %549 = vmatprep.subr.mxu0 0.0
          %550 = vmatpush2.msra.mxu0 0.0
          %551 = vmatprep.subr.mxu0 0.0
          %552 = vmatpush2.msra.mxu0 0.0
          %553 = vmatprep.mubr.f32.mxu0 0.0
          %554 = vmatmul.mubr.f32.gmra.mxu0 %v483
          %v555 = vpop.f32.mrf.mxu0
          %v556 = vadd.f32 0.0, %v555
          %v557 = vpop.f32.mrf.mxu0
          %558 = vdwg.mxu0
          %v559 = vmul.f32 %v479, %v479
          %v560 = vsel %vm481, %v559, 0.0
          %561 = vadd.xlane.f32.xlu0 %v560
          %v562 = vpop.xlane.xlu0 %561
          %v563 = vmul.f32 %v480, %v480
          %v564 = vsel %vm485, %v563, 0.0
          %v565 = vrot.slane %v564, 4
          %v566 = vadd.f32 %v564, %v565
          %v567 = vrot.slane %v566, 2
          %v568 = vadd.f32 %v566, %v567
          %v569 = vrot.slane %v568, 1
          %v570 = vadd.f32 %v568, %v569
          %v571 = vadd.f32 %v562, %v570
          %v572 = vmul.f32 %v556, 2.0
          %v573 = vsub.f32 %v571, %v572
          %v574 = vld [vmem:[%s457] sm:$0xff]
          %v575 = vld [vmem:[#allocation8] sm:$0x1]
          %576 = vset.pattern.permute.xlu0 0
          %577 = vperm.xlu0 %576, %v574
          %v578 = vpop.permute.xlu0 %577
          %v579 = vlaneseq
          %v580 = vshrl.u32 %v579, 7
          %v581 = vsub.s32 0, %v580
          %v582 = vrot.slane %v575, %v581
          %vm583 = vcmp.eq.s32.totalorder %v578, %v582
          %vm584 = vcmp.le.f32.partialorder %v573, 0.09
          %vm585 = vmand %vm583, %vm584
          %v586 = vsel %vm585, 0.0, -1e+30
          %v587 = vlaneseq
          %v588 = vshrl.u32 %v587, 7
          %v589 = vsub.s32 0, %v588
          %v590 = vrot.slane %v586, %v589
          %592 = vbcast.lane.b32.xlu0 %v590, 256
          %v593 = vpop.permute.xlu0 %592
          %s595 = sor.u32 256, 8
          %596 = vbcast.lane.b32.xlu0 %v590, %s595
          %v597 = vpop.permute.xlu0 %596
          %v598 = vlaneseq
          %v599 = vshrl.u32 %v598, 7
          %v600 = vsub.s32 1, %v599
          %v601 = vrot.slane %v586, %v600
          %603 = vbcast.lane.b32.xlu0 %v601, 256
          %v604 = vpop.permute.xlu0 %603
          %s606 = sor.u32 256, 8
          %607 = vbcast.lane.b32.xlu0 %v601, %s606
          %v608 = vpop.permute.xlu0 %607
          %v609 = vlaneseq
          %v610 = vshrl.u32 %v609, 7
          %v611 = vsub.s32 2, %v610
          %v612 = vrot.slane %v586, %v611
          %614 = vbcast.lane.b32.xlu0 %v612, 256
          %v615 = vpop.permute.xlu0 %614
          %s617 = sor.u32 256, 8
          %618 = vbcast.lane.b32.xlu0 %v612, %s617
          %v619 = vpop.permute.xlu0 %618
          %v620 = vlaneseq
          %v621 = vshrl.u32 %v620, 7
          %v622 = vsub.s32 3, %v621
          %v623 = vrot.slane %v586, %v622
          %625 = vbcast.lane.b32.xlu0 %v623, 256
          %v626 = vpop.permute.xlu0 %625
          %s628 = sor.u32 256, 8
          %629 = vbcast.lane.b32.xlu0 %v623, %s628
          %v630 = vpop.permute.xlu0 %629
          %v631 = vlaneseq
          %v632 = vshrl.u32 %v631, 7
          %v633 = vsub.s32 4, %v632
          %v634 = vrot.slane %v586, %v633
          %636 = vbcast.lane.b32.xlu0 %v634, 256
          %v637 = vpop.permute.xlu0 %636
          %s639 = sor.u32 256, 8
          %640 = vbcast.lane.b32.xlu0 %v634, %s639
          %v641 = vpop.permute.xlu0 %640
          %v642 = vlaneseq
          %v643 = vshrl.u32 %v642, 7
          %v644 = vsub.s32 5, %v643
          %v645 = vrot.slane %v586, %v644
          %647 = vbcast.lane.b32.xlu0 %v645, 256
          %v648 = vpop.permute.xlu0 %647
          %s650 = sor.u32 256, 8
          %651 = vbcast.lane.b32.xlu0 %v645, %s650
          %v652 = vpop.permute.xlu0 %651
          %v653 = vlaneseq
          %v654 = vshrl.u32 %v653, 7
          %v655 = vsub.s32 6, %v654
          %v656 = vrot.slane %v586, %v655
          %658 = vbcast.lane.b32.xlu0 %v656, 256
          %v659 = vpop.permute.xlu0 %658
          %s661 = sor.u32 256, 8
          %662 = vbcast.lane.b32.xlu0 %v656, %s661
          %v663 = vpop.permute.xlu0 %662
          %v664 = vlaneseq
          %v665 = vshrl.u32 %v664, 7
          %v666 = vsub.s32 7, %v665
          %v667 = vrot.slane %v586, %v666
          %669 = vbcast.lane.b32.xlu0 %v667, 256
          %v670 = vpop.permute.xlu0 %669
          %s672 = sor.u32 256, 8
          %673 = vbcast.lane.b32.xlu0 %v667, %s672
          %v674 = vpop.permute.xlu0 %673
          %s676 = sor.u32 256, 16
          %677 = vbcast.lane.b32.xlu0 %v590, %s676
          %v678 = vpop.permute.xlu0 %677
          %s680 = sor.u32 256, 24
          %681 = vbcast.lane.b32.xlu0 %v590, %s680
          %v682 = vpop.permute.xlu0 %681
          %s684 = sor.u32 256, 16
          %685 = vbcast.lane.b32.xlu0 %v601, %s684
          %v686 = vpop.permute.xlu0 %685
          %s688 = sor.u32 256, 24
          %689 = vbcast.lane.b32.xlu0 %v601, %s688
          %v690 = vpop.permute.xlu0 %689
          %s692 = sor.u32 256, 16
          %693 = vbcast.lane.b32.xlu0 %v612, %s692
          %v694 = vpop.permute.xlu0 %693
          %s696 = sor.u32 256, 24
          %697 = vbcast.lane.b32.xlu0 %v612, %s696
          %v698 = vpop.permute.xlu0 %697
          %s700 = sor.u32 256, 16
          %701 = vbcast.lane.b32.xlu0 %v623, %s700
          %v702 = vpop.permute.xlu0 %701
          %s704 = sor.u32 256, 24
          %705 = vbcast.lane.b32.xlu0 %v623, %s704
          %v706 = vpop.permute.xlu0 %705
          %s708 = sor.u32 256, 16
          %709 = vbcast.lane.b32.xlu0 %v634, %s708
          %v710 = vpop.permute.xlu0 %709
          %s712 = sor.u32 256, 24
          %713 = vbcast.lane.b32.xlu0 %v634, %s712
          %v714 = vpop.permute.xlu0 %713
          %s716 = sor.u32 256, 16
          %717 = vbcast.lane.b32.xlu0 %v645, %s716
          %v718 = vpop.permute.xlu0 %717
          %s720 = sor.u32 256, 24
          %721 = vbcast.lane.b32.xlu0 %v645, %s720
          %v722 = vpop.permute.xlu0 %721
          %s724 = sor.u32 256, 16
          %725 = vbcast.lane.b32.xlu0 %v656, %s724
          %v726 = vpop.permute.xlu0 %725
          %s728 = sor.u32 256, 24
          %729 = vbcast.lane.b32.xlu0 %v656, %s728
          %v730 = vpop.permute.xlu0 %729
          %s732 = sor.u32 256, 16
          %733 = vbcast.lane.b32.xlu0 %v667, %s732
          %v734 = vpop.permute.xlu0 %733
          %s736 = sor.u32 256, 24
          %737 = vbcast.lane.b32.xlu0 %v667, %s736
          %v738 = vpop.permute.xlu0 %737
          %s740 = sor.u32 256, 32
          %741 = vbcast.lane.b32.xlu0 %v590, %s740
          %v742 = vpop.permute.xlu0 %741
          %s744 = sor.u32 256, 40
          %745 = vbcast.lane.b32.xlu0 %v590, %s744
          %v746 = vpop.permute.xlu0 %745
          %s748 = sor.u32 256, 32
          %749 = vbcast.lane.b32.xlu0 %v601, %s748
          %v750 = vpop.permute.xlu0 %749
          %s752 = sor.u32 256, 40
          %753 = vbcast.lane.b32.xlu0 %v601, %s752
          %v754 = vpop.permute.xlu0 %753
          %s756 = sor.u32 256, 32
          %757 = vbcast.lane.b32.xlu0 %v612, %s756
          %v758 = vpop.permute.xlu0 %757
          %s760 = sor.u32 256, 40
          %761 = vbcast.lane.b32.xlu0 %v612, %s760
          %v762 = vpop.permute.xlu0 %761
          %s764 = sor.u32 256, 32
          %765 = vbcast.lane.b32.xlu0 %v623, %s764
          %v766 = vpop.permute.xlu0 %765
          %s768 = sor.u32 256, 40
          %769 = vbcast.lane.b32.xlu0 %v623, %s768
          %v770 = vpop.permute.xlu0 %769
          %s772 = sor.u32 256, 32
          %773 = vbcast.lane.b32.xlu0 %v634, %s772
          %v774 = vpop.permute.xlu0 %773
          %s776 = sor.u32 256, 40
          %777 = vbcast.lane.b32.xlu0 %v634, %s776
          %v778 = vpop.permute.xlu0 %777
          %s780 = sor.u32 256, 32
          %781 = vbcast.lane.b32.xlu0 %v645, %s780
          %v782 = vpop.permute.xlu0 %781
          %s784 = sor.u32 256, 40
          %785 = vbcast.lane.b32.xlu0 %v645, %s784
          %v786 = vpop.permute.xlu0 %785
          %s788 = sor.u32 256, 32
          %789 = vbcast.lane.b32.xlu0 %v656, %s788
          %v790 = vpop.permute.xlu0 %789
          %s792 = sor.u32 256, 40
          %793 = vbcast.lane.b32.xlu0 %v656, %s792
          %v794 = vpop.permute.xlu0 %793
          %s796 = sor.u32 256, 32
          %797 = vbcast.lane.b32.xlu0 %v667, %s796
          %v798 = vpop.permute.xlu0 %797
          %s800 = sor.u32 256, 40
          %801 = vbcast.lane.b32.xlu0 %v667, %s800
          %v802 = vpop.permute.xlu0 %801
          %s804 = sor.u32 256, 48
          %805 = vbcast.lane.b32.xlu0 %v590, %s804
          %v806 = vpop.permute.xlu0 %805
          %s808 = sor.u32 256, 56
          %809 = vbcast.lane.b32.xlu0 %v590, %s808
          %v810 = vpop.permute.xlu0 %809
          %s812 = sor.u32 256, 48
          %813 = vbcast.lane.b32.xlu0 %v601, %s812
          %v814 = vpop.permute.xlu0 %813
          %s816 = sor.u32 256, 56
          %817 = vbcast.lane.b32.xlu0 %v601, %s816
          %v818 = vpop.permute.xlu0 %817
          %s820 = sor.u32 256, 48
          %821 = vbcast.lane.b32.xlu0 %v612, %s820
          %v822 = vpop.permute.xlu0 %821
          %s824 = sor.u32 256, 56
          %825 = vbcast.lane.b32.xlu0 %v612, %s824
          %v826 = vpop.permute.xlu0 %825
          %s828 = sor.u32 256, 48
          %829 = vbcast.lane.b32.xlu0 %v623, %s828
          %v830 = vpop.permute.xlu0 %829
          %s832 = sor.u32 256, 56
          %833 = vbcast.lane.b32.xlu0 %v623, %s832
          %v834 = vpop.permute.xlu0 %833
          %s836 = sor.u32 256, 48
          %837 = vbcast.lane.b32.xlu0 %v634, %s836
          %v838 = vpop.permute.xlu0 %837
          %s840 = sor.u32 256, 56
          %841 = vbcast.lane.b32.xlu0 %v634, %s840
          %v842 = vpop.permute.xlu0 %841
          %s844 = sor.u32 256, 48
          %845 = vbcast.lane.b32.xlu0 %v645, %s844
          %v846 = vpop.permute.xlu0 %845
          %s848 = sor.u32 256, 56
          %849 = vbcast.lane.b32.xlu0 %v645, %s848
          %v850 = vpop.permute.xlu0 %849
          %s852 = sor.u32 256, 48
          %853 = vbcast.lane.b32.xlu0 %v656, %s852
          %v854 = vpop.permute.xlu0 %853
          %s856 = sor.u32 256, 56
          %857 = vbcast.lane.b32.xlu0 %v656, %s856
          %v858 = vpop.permute.xlu0 %857
          %s860 = sor.u32 256, 48
          %861 = vbcast.lane.b32.xlu0 %v667, %s860
          %v862 = vpop.permute.xlu0 %861
          %s864 = sor.u32 256, 56
          %865 = vbcast.lane.b32.xlu0 %v667, %s864
          %v866 = vpop.permute.xlu0 %865
          %s868 = sor.u32 256, 64
          %869 = vbcast.lane.b32.xlu0 %v590, %s868
          %v870 = vpop.permute.xlu0 %869
          %s872 = sor.u32 256, 72
          %873 = vbcast.lane.b32.xlu0 %v590, %s872
          %v874 = vpop.permute.xlu0 %873
          %s876 = sor.u32 256, 64
          %877 = vbcast.lane.b32.xlu0 %v601, %s876
          %v878 = vpop.permute.xlu0 %877
          %s880 = sor.u32 256, 72
          %881 = vbcast.lane.b32.xlu0 %v601, %s880
          %v882 = vpop.permute.xlu0 %881
          %s884 = sor.u32 256, 64
          %885 = vbcast.lane.b32.xlu0 %v612, %s884
          %v886 = vpop.permute.xlu0 %885
          %s888 = sor.u32 256, 72
          %889 = vbcast.lane.b32.xlu0 %v612, %s888
          %v890 = vpop.permute.xlu0 %889
          %s892 = sor.u32 256, 64
          %893 = vbcast.lane.b32.xlu0 %v623, %s892
          %v894 = vpop.permute.xlu0 %893
          %s896 = sor.u32 256, 72
          %897 = vbcast.lane.b32.xlu0 %v623, %s896
          %v898 = vpop.permute.xlu0 %897
          %s900 = sor.u32 256, 64
          %901 = vbcast.lane.b32.xlu0 %v634, %s900
          %v902 = vpop.permute.xlu0 %901
          %s904 = sor.u32 256, 72
          %905 = vbcast.lane.b32.xlu0 %v634, %s904
          %v906 = vpop.permute.xlu0 %905
          %s908 = sor.u32 256, 64
          %909 = vbcast.lane.b32.xlu0 %v645, %s908
          %v910 = vpop.permute.xlu0 %909
          %s912 = sor.u32 256, 72
          %913 = vbcast.lane.b32.xlu0 %v645, %s912
          %v914 = vpop.permute.xlu0 %913
          %s916 = sor.u32 256, 64
          %917 = vbcast.lane.b32.xlu0 %v656, %s916
          %v918 = vpop.permute.xlu0 %917
          %s920 = sor.u32 256, 72
          %921 = vbcast.lane.b32.xlu0 %v656, %s920
          %v922 = vpop.permute.xlu0 %921
          %s924 = sor.u32 256, 64
          %925 = vbcast.lane.b32.xlu0 %v667, %s924
          %v926 = vpop.permute.xlu0 %925
          %s928 = sor.u32 256, 72
          %929 = vbcast.lane.b32.xlu0 %v667, %s928
          %v930 = vpop.permute.xlu0 %929
          %s932 = sor.u32 256, 80
          %933 = vbcast.lane.b32.xlu0 %v590, %s932
          %v934 = vpop.permute.xlu0 %933
          %s936 = sor.u32 256, 88
          %937 = vbcast.lane.b32.xlu0 %v590, %s936
          %v938 = vpop.permute.xlu0 %937
          %s940 = sor.u32 256, 80
          %941 = vbcast.lane.b32.xlu0 %v601, %s940
          %v942 = vpop.permute.xlu0 %941
          %s944 = sor.u32 256, 88
          %945 = vbcast.lane.b32.xlu0 %v601, %s944
          %v946 = vpop.permute.xlu0 %945
          %s948 = sor.u32 256, 80
          %949 = vbcast.lane.b32.xlu0 %v612, %s948
          %v950 = vpop.permute.xlu0 %949
          %s952 = sor.u32 256, 88
          %953 = vbcast.lane.b32.xlu0 %v612, %s952
          %v954 = vpop.permute.xlu0 %953
          %s956 = sor.u32 256, 80
          %957 = vbcast.lane.b32.xlu0 %v623, %s956
          %v958 = vpop.permute.xlu0 %957
          %s960 = sor.u32 256, 88
          %961 = vbcast.lane.b32.xlu0 %v623, %s960
          %v962 = vpop.permute.xlu0 %961
          %s964 = sor.u32 256, 80
          %965 = vbcast.lane.b32.xlu0 %v634, %s964
          %v966 = vpop.permute.xlu0 %965
          %s968 = sor.u32 256, 88
          %969 = vbcast.lane.b32.xlu0 %v634, %s968
          %v970 = vpop.permute.xlu0 %969
          %s972 = sor.u32 256, 80
          %973 = vbcast.lane.b32.xlu0 %v645, %s972
          %v974 = vpop.permute.xlu0 %973
          %s976 = sor.u32 256, 88
          %977 = vbcast.lane.b32.xlu0 %v645, %s976
          %v978 = vpop.permute.xlu0 %977
          %s980 = sor.u32 256, 80
          %981 = vbcast.lane.b32.xlu0 %v656, %s980
          %v982 = vpop.permute.xlu0 %981
          %s984 = sor.u32 256, 88
          %985 = vbcast.lane.b32.xlu0 %v656, %s984
          %v986 = vpop.permute.xlu0 %985
          %s988 = sor.u32 256, 80
          %989 = vbcast.lane.b32.xlu0 %v667, %s988
          %v990 = vpop.permute.xlu0 %989
          %s992 = sor.u32 256, 88
          %993 = vbcast.lane.b32.xlu0 %v667, %s992
          %v994 = vpop.permute.xlu0 %993
          %s996 = sor.u32 256, 96
          %997 = vbcast.lane.b32.xlu0 %v590, %s996
          %v998 = vpop.permute.xlu0 %997
          %s1000 = sor.u32 256, 104
          %1001 = vbcast.lane.b32.xlu0 %v590, %s1000
          %v1002 = vpop.permute.xlu0 %1001
          %s1004 = sor.u32 256, 96
          %1005 = vbcast.lane.b32.xlu0 %v601, %s1004
          %v1006 = vpop.permute.xlu0 %1005
          %s1008 = sor.u32 256, 104
          %1009 = vbcast.lane.b32.xlu0 %v601, %s1008
          %v1010 = vpop.permute.xlu0 %1009
          %s1012 = sor.u32 256, 96
          %1013 = vbcast.lane.b32.xlu0 %v612, %s1012
          %v1014 = vpop.permute.xlu0 %1013
          %s1016 = sor.u32 256, 104
          %1017 = vbcast.lane.b32.xlu0 %v612, %s1016
          %v1018 = vpop.permute.xlu0 %1017
          %s1020 = sor.u32 256, 96
          %1021 = vbcast.lane.b32.xlu0 %v623, %s1020
          %v1022 = vpop.permute.xlu0 %1021
          %s1024 = sor.u32 256, 104
          %1025 = vbcast.lane.b32.xlu0 %v623, %s1024
          %v1026 = vpop.permute.xlu0 %1025
          %s1028 = sor.u32 256, 96
          %1029 = vbcast.lane.b32.xlu0 %v634, %s1028
          %v1030 = vpop.permute.xlu0 %1029
          %s1032 = sor.u32 256, 104
          %1033 = vbcast.lane.b32.xlu0 %v634, %s1032
          %v1034 = vpop.permute.xlu0 %1033
          %s1036 = sor.u32 256, 96
          %1037 = vbcast.lane.b32.xlu0 %v645, %s1036
          %v1038 = vpop.permute.xlu0 %1037
          %s1040 = sor.u32 256, 104
          %1041 = vbcast.lane.b32.xlu0 %v645, %s1040
          %v1042 = vpop.permute.xlu0 %1041
          %s1044 = sor.u32 256, 96
          %1045 = vbcast.lane.b32.xlu0 %v656, %s1044
          %v1046 = vpop.permute.xlu0 %1045
          %s1048 = sor.u32 256, 104
          %1049 = vbcast.lane.b32.xlu0 %v656, %s1048
          %v1050 = vpop.permute.xlu0 %1049
          %s1052 = sor.u32 256, 96
          %1053 = vbcast.lane.b32.xlu0 %v667, %s1052
          %v1054 = vpop.permute.xlu0 %1053
          %s1056 = sor.u32 256, 104
          %1057 = vbcast.lane.b32.xlu0 %v667, %s1056
          %v1058 = vpop.permute.xlu0 %1057
          %s1060 = sor.u32 256, 112
          %1061 = vbcast.lane.b32.xlu0 %v590, %s1060
          %v1062 = vpop.permute.xlu0 %1061
          %s1064 = sor.u32 256, 120
          %1065 = vbcast.lane.b32.xlu0 %v590, %s1064
          %v1066 = vpop.permute.xlu0 %1065
          %s1068 = sor.u32 256, 112
          %1069 = vbcast.lane.b32.xlu0 %v601, %s1068
          %v1070 = vpop.permute.xlu0 %1069
          %s1072 = sor.u32 256, 120
          %1073 = vbcast.lane.b32.xlu0 %v601, %s1072
          %v1074 = vpop.permute.xlu0 %1073
          %s1076 = sor.u32 256, 112
          %1077 = vbcast.lane.b32.xlu0 %v612, %s1076
          %v1078 = vpop.permute.xlu0 %1077
          %s1080 = sor.u32 256, 120
          %1081 = vbcast.lane.b32.xlu0 %v612, %s1080
          %v1082 = vpop.permute.xlu0 %1081
          %s1084 = sor.u32 256, 112
          %1085 = vbcast.lane.b32.xlu0 %v623, %s1084
          %v1086 = vpop.permute.xlu0 %1085
          %s1088 = sor.u32 256, 120
          %1089 = vbcast.lane.b32.xlu0 %v623, %s1088
          %v1090 = vpop.permute.xlu0 %1089
          %s1092 = sor.u32 256, 112
          %1093 = vbcast.lane.b32.xlu0 %v634, %s1092
          %v1094 = vpop.permute.xlu0 %1093
          %s1096 = sor.u32 256, 120
          %1097 = vbcast.lane.b32.xlu0 %v634, %s1096
          %v1098 = vpop.permute.xlu0 %1097
          %s1100 = sor.u32 256, 112
          %1101 = vbcast.lane.b32.xlu0 %v645, %s1100
          %v1102 = vpop.permute.xlu0 %1101
          %s1104 = sor.u32 256, 120
          %1105 = vbcast.lane.b32.xlu0 %v645, %s1104
          %v1106 = vpop.permute.xlu0 %1105
          %s1108 = sor.u32 256, 112
          %1109 = vbcast.lane.b32.xlu0 %v656, %s1108
          %v1110 = vpop.permute.xlu0 %1109
          %s1112 = sor.u32 256, 120
          %1113 = vbcast.lane.b32.xlu0 %v656, %s1112
          %v1114 = vpop.permute.xlu0 %1113
          %s1116 = sor.u32 256, 112
          %1117 = vbcast.lane.b32.xlu0 %v667, %s1116
          %v1118 = vpop.permute.xlu0 %1117
          %s1120 = sor.u32 256, 120
          %1121 = vbcast.lane.b32.xlu0 %v667, %s1120
          %v1122 = vpop.permute.xlu0 %1121
          %vm1123 = vcmask 261120
          %v1124 = vsel %vm1123, %v593, %v678
          %v1125 = vsel %vm1123, %v597, %v682
          %v1126 = vsel %vm1123, %v604, %v686
          %v1127 = vsel %vm1123, %v608, %v690
          %v1128 = vsel %vm1123, %v615, %v694
          %v1129 = vsel %vm1123, %v619, %v698
          %v1130 = vsel %vm1123, %v626, %v702
          %v1131 = vsel %vm1123, %v630, %v706
          %v1132 = vsel %vm1123, %v637, %v710
          %v1133 = vsel %vm1123, %v641, %v714
          %v1134 = vsel %vm1123, %v648, %v718
          %v1135 = vsel %vm1123, %v652, %v722
          %v1136 = vsel %vm1123, %v659, %v726
          %v1137 = vsel %vm1123, %v663, %v730
          %v1138 = vsel %vm1123, %v670, %v734
          %v1139 = vsel %vm1123, %v674, %v738
          %vm1140 = vcmask 523264
          %v1141 = vsel %vm1140, %v1124, %v742
          %v1142 = vsel %vm1140, %v1125, %v746
          %v1143 = vsel %vm1140, %v1126, %v750
          %v1144 = vsel %vm1140, %v1127, %v754
          %v1145 = vsel %vm1140, %v1128, %v758
          %v1146 = vsel %vm1140, %v1129, %v762
          %v1147 = vsel %vm1140, %v1130, %v766
          %v1148 = vsel %vm1140, %v1131, %v770
          %v1149 = vsel %vm1140, %v1132, %v774
          %v1150 = vsel %vm1140, %v1133, %v778
          %v1151 = vsel %vm1140, %v1134, %v782
          %v1152 = vsel %vm1140, %v1135, %v786
          %v1153 = vsel %vm1140, %v1136, %v790
          %v1154 = vsel %vm1140, %v1137, %v794
          %v1155 = vsel %vm1140, %v1138, %v798
          %v1156 = vsel %vm1140, %v1139, %v802
          %vm1157 = vcmask 785408
          %v1158 = vsel %vm1157, %v1141, %v806
          %v1159 = vsel %vm1157, %v1142, %v810
          %v1160 = vsel %vm1157, %v1143, %v814
          %v1161 = vsel %vm1157, %v1144, %v818
          %v1162 = vsel %vm1157, %v1145, %v822
          %v1163 = vsel %vm1157, %v1146, %v826
          %v1164 = vsel %vm1157, %v1147, %v830
          %v1165 = vsel %vm1157, %v1148, %v834
          %v1166 = vsel %vm1157, %v1149, %v838
          %v1167 = vsel %vm1157, %v1150, %v842
          %v1168 = vsel %vm1157, %v1151, %v846
          %v1169 = vsel %vm1157, %v1152, %v850
          %v1170 = vsel %vm1157, %v1153, %v854
          %v1171 = vsel %vm1157, %v1154, %v858
          %v1172 = vsel %vm1157, %v1155, %v862
          %v1173 = vsel %vm1157, %v1156, %v866
          %v1174 = vsel %vm1123, %v870, %v934
          %v1175 = vsel %vm1123, %v874, %v938
          %v1176 = vsel %vm1123, %v878, %v942
          %v1177 = vsel %vm1123, %v882, %v946
          %v1178 = vsel %vm1123, %v886, %v950
          %v1179 = vsel %vm1123, %v890, %v954
          %v1180 = vsel %vm1123, %v894, %v958
          %v1181 = vsel %vm1123, %v898, %v962
          %v1182 = vsel %vm1123, %v902, %v966
          %v1183 = vsel %vm1123, %v906, %v970
          %v1184 = vsel %vm1123, %v910, %v974
          %v1185 = vsel %vm1123, %v914, %v978
          %v1186 = vsel %vm1123, %v918, %v982
          %v1187 = vsel %vm1123, %v922, %v986
          %v1188 = vsel %vm1123, %v926, %v990
          %v1189 = vsel %vm1123, %v930, %v994
          %v1190 = vsel %vm1140, %v1174, %v998
          %v1191 = vsel %vm1140, %v1175, %v1002
          %v1192 = vsel %vm1140, %v1176, %v1006
          %v1193 = vsel %vm1140, %v1177, %v1010
          %v1194 = vsel %vm1140, %v1178, %v1014
          %v1195 = vsel %vm1140, %v1179, %v1018
          %v1196 = vsel %vm1140, %v1180, %v1022
          %v1197 = vsel %vm1140, %v1181, %v1026
          %v1198 = vsel %vm1140, %v1182, %v1030
          %v1199 = vsel %vm1140, %v1183, %v1034
          %v1200 = vsel %vm1140, %v1184, %v1038
          %v1201 = vsel %vm1140, %v1185, %v1042
          %v1202 = vsel %vm1140, %v1186, %v1046
          %v1203 = vsel %vm1140, %v1187, %v1050
          %v1204 = vsel %vm1140, %v1188, %v1054
          %v1205 = vsel %vm1140, %v1189, %v1058
          %v1206 = vsel %vm1157, %v1190, %v1062
          %v1207 = vsel %vm1157, %v1191, %v1066
          %v1208 = vsel %vm1157, %v1192, %v1070
          %v1209 = vsel %vm1157, %v1193, %v1074
          %v1210 = vsel %vm1157, %v1194, %v1078
          %v1211 = vsel %vm1157, %v1195, %v1082
          %v1212 = vsel %vm1157, %v1196, %v1086
          %v1213 = vsel %vm1157, %v1197, %v1090
          %v1214 = vsel %vm1157, %v1198, %v1094
          %v1215 = vsel %vm1157, %v1199, %v1098
          %v1216 = vsel %vm1157, %v1200, %v1102
          %v1217 = vsel %vm1157, %v1201, %v1106
          %v1218 = vsel %vm1157, %v1202, %v1110
          %v1219 = vsel %vm1157, %v1203, %v1114
          %v1220 = vsel %vm1157, %v1204, %v1118
          %v1221 = vsel %vm1157, %v1205, %v1122
          %v1222 = vld [vmem:[#allocation10] sm:$0xff]
          %v1223 = vld [vmem:[#allocation10 + $0x8] sm:$0xff]
          %v1224 = vld [vmem:[%s8] sm:$0xff]
          %v1225 = vld [vmem:[%s8 + $0x8] sm:$0xff]
          %v1226 = vld [vmem:[%s8 + $0x10] sm:$0xff]
          %v1227 = vld [vmem:[%s8 + $0x18] sm:$0xff]
          %v1228 = vld [vmem:[%s8 + $0x20] sm:$0xff]
          %v1229 = vld [vmem:[%s8 + $0x28] sm:$0xff]
          %vm1230 = vcmask 195584
          %v1232 = vsel %vm1230, %v1222, 0
          %v1235 = vsel %vm1230, %v1223, 0
          %1237 = vmatprep.subr.mxu0 0.0
          %1238 = vmatpush1.msra.mxu0 0.0
          %1239 = vmatprep.subr.mxu0 0.0
          %1240 = vmatpush1.msra.mxu0 0.0
          %1241 = vmatprep.subr.mxu0 0.0
          %1242 = vmatpush1.msra.mxu0 0.0
          %1243 = vmatprep.subr.mxu0 0.0
          %1244 = vmatpush1.msra.mxu0 0.0
          %1245 = vmatprep.subr.mxu0 0.0
          %1246 = vmatpush1.msra.mxu0 0.0
          %1247 = vmatprep.subr.mxu0 0.0
          %1248 = vmatpush1.msra.mxu0 0.0
          %1249 = vmatprep.subr.mxu0 0.0
          %1250 = vmatpush1.msra.mxu0 0.0
          %1251 = vmatprep.subr.mxu0 0.0
          %1252 = vmatpush1.msra.mxu0 0.0
          %1253 = vmatprep.subr.mxu0 0.0
          %1254 = vmatpush1.msra.mxu0 0.0
          %1255 = vmatprep.subr.mxu0 0.0
          %1256 = vmatpush1.msra.mxu0 0.0
          %1257 = vmatprep.subr.mxu0 0.0
          %1258 = vmatpush1.msra.mxu0 0.0
          %1259 = vmatprep.subr.mxu0 0.0
          %1260 = vmatpush1.msra.mxu0 0.0
          %1261 = vmatprep.subr.mxu0 0.0
          %1262 = vmatpush1.msra.mxu0 0.0
          %1263 = vmatprep.subr.mxu0 %v1229
          %1264 = vmatpush1.msra.mxu0 %v1228
          %1265 = vmatprep.subr.mxu0 %v1227
          %1266 = vmatpush1.msra.mxu0 %v1226
          %1267 = vmatprep.subr.mxu0 %v1225
          %1268 = vmatpush1.msra.mxu0 %v1224
          %1269 = vmatprep.subr.mxu0 0.0
          %1270 = vmatpush2.msra.mxu0 0.0
          %1271 = vmatprep.subr.mxu0 0.0
          %1272 = vmatpush2.msra.mxu0 0.0
          %1273 = vmatprep.subr.mxu0 0.0
          %1274 = vmatpush2.msra.mxu0 0.0
          %1275 = vmatprep.subr.mxu0 0.0
          %1276 = vmatpush2.msra.mxu0 0.0
          %1277 = vmatprep.subr.mxu0 0.0
          %1278 = vmatpush2.msra.mxu0 0.0
          %1279 = vmatprep.subr.mxu0 0.0
          %1280 = vmatpush2.msra.mxu0 0.0
          %1281 = vmatprep.subr.mxu0 0.0
          %1282 = vmatpush2.msra.mxu0 0.0
          %1283 = vmatprep.subr.mxu0 0.0
          %1284 = vmatpush2.msra.mxu0 0.0
          %1285 = vmatprep.subr.mxu0 0.0
          %1286 = vmatpush2.msra.mxu0 0.0
          %1287 = vmatprep.subr.mxu0 0.0
          %1288 = vmatpush2.msra.mxu0 0.0
          %1289 = vmatprep.subr.mxu0 0.0
          %1290 = vmatpush2.msra.mxu0 0.0
          %1291 = vmatprep.subr.mxu0 0.0
          %1292 = vmatpush2.msra.mxu0 0.0
          %1293 = vmatprep.subr.mxu0 0.0
          %1294 = vmatpush2.msra.mxu0 0.0
          %1295 = vmatprep.subr.mxu0 0.0
          %1296 = vmatpush2.msra.mxu0 0.0
          %1297 = vmatprep.subr.mxu0 0.0
          %1298 = vmatpush2.msra.mxu0 0.0
          %1299 = vmatprep.subr.mxu0 0.0
          %1300 = vmatpush2.msra.mxu0 0.0
          %1301 = vmatprep.mubr.f32.mxu0 0.0
          %1302 = vmatmul.mubr.f32.gmra.mxu0 %v1232
          %v1303 = vpop.f32.mrf.mxu0
          %v1304 = vadd.f32 0.0, %v1303
          %v1305 = vpop.f32.mrf.mxu0
          %v1306 = vadd.f32 0.0, %v1305
          %1307 = vmatprep.mubr.f32.mxu0 0.0
          %1308 = vmatmul.mubr.f32.gmra.mxu0 %v1235
          %v1309 = vpop.f32.mrf.mxu0
          %v1310 = vadd.f32 0.0, %v1309
          %v1311 = vpop.f32.mrf.mxu0
          %v1312 = vadd.f32 0.0, %v1311
          %1313 = vdwg.mxu0
          %v1314 = vld [vmem:[#allocation11] sm:$0x77]
          %v1316 = vcombine.high %v1314, %v1314
          %v1317 = vsel %vm485, %v1314, 0
          %v1319 = vsel %vm485, %v1316, 0
          %1321 = vmatprep.subr.mxu0 0.0
          %1322 = vmatpush1.msra.mxu0 0.0
          %1323 = vmatprep.subr.mxu0 0.0
          %1324 = vmatpush1.msra.mxu0 0.0
          %1325 = vmatprep.subr.mxu0 0.0
          %1326 = vmatpush1.msra.mxu0 0.0
          %1327 = vmatprep.subr.mxu0 0.0
          %1328 = vmatpush1.msra.mxu0 0.0
          %1329 = vmatprep.subr.mxu0 0.0
          %1330 = vmatpush1.msra.mxu0 0.0
          %1331 = vmatprep.subr.mxu0 0.0
          %1332 = vmatpush1.msra.mxu0 0.0
          %1333 = vmatprep.subr.mxu0 0.0
          %1334 = vmatpush1.msra.mxu0 0.0
          %1335 = vmatprep.subr.mxu0 0.0
          %1336 = vmatpush1.msra.mxu0 0.0
          %1337 = vmatprep.subr.mxu0 0.0
          %1338 = vmatpush1.msra.mxu0 0.0
          %1339 = vmatprep.subr.mxu0 0.0
          %1340 = vmatpush1.msra.mxu0 0.0
          %1341 = vmatprep.subr.mxu0 0.0
          %1342 = vmatpush1.msra.mxu0 0.0
          %1343 = vmatprep.subr.mxu0 0.0
          %1344 = vmatpush1.msra.mxu0 0.0
          %1345 = vmatprep.subr.mxu0 0.0
          %1346 = vmatpush1.msra.mxu0 0.0
          %1347 = vmatprep.subr.mxu0 0.0
          %1348 = vmatpush1.msra.mxu0 0.0
          %1349 = vmatprep.subr.mxu0 0.0
          %1350 = vmatpush1.msra.mxu0 0.0
          %1351 = vmatprep.subr.mxu0 %v1319
          %1352 = vmatpush1.msra.mxu0 %v1317
          %1353 = vmatprep.subr.mxu0 0.0
          %1354 = vmatpush2.msra.mxu0 0.0
          %1355 = vmatprep.subr.mxu0 0.0
          %1356 = vmatpush2.msra.mxu0 0.0
          %1357 = vmatprep.subr.mxu0 0.0
          %1358 = vmatpush2.msra.mxu0 0.0
          %1359 = vmatprep.subr.mxu0 0.0
          %1360 = vmatpush2.msra.mxu0 0.0
          %1361 = vmatprep.subr.mxu0 0.0
          %1362 = vmatpush2.msra.mxu0 0.0
          %1363 = vmatprep.subr.mxu0 0.0
          %1364 = vmatpush2.msra.mxu0 0.0
          %1365 = vmatprep.subr.mxu0 0.0
          %1366 = vmatpush2.msra.mxu0 0.0
          %1367 = vmatprep.subr.mxu0 0.0
          %1368 = vmatpush2.msra.mxu0 0.0
          %1369 = vmatprep.subr.mxu0 0.0
          %1370 = vmatpush2.msra.mxu0 0.0
          %1371 = vmatprep.subr.mxu0 0.0
          %1372 = vmatpush2.msra.mxu0 0.0
          %1373 = vmatprep.subr.mxu0 0.0
          %1374 = vmatpush2.msra.mxu0 0.0
          %1375 = vmatprep.subr.mxu0 0.0
          %1376 = vmatpush2.msra.mxu0 0.0
          %1377 = vmatprep.subr.mxu0 0.0
          %1378 = vmatpush2.msra.mxu0 0.0
          %1379 = vmatprep.subr.mxu0 0.0
          %1380 = vmatpush2.msra.mxu0 0.0
          %1381 = vmatprep.subr.mxu0 0.0
          %1382 = vmatpush2.msra.mxu0 0.0
          %1383 = vmatprep.subr.mxu0 0.0
          %1384 = vmatpush2.msra.mxu0 0.0
          %1385 = vmatprep.mubr.f32.mxu0 0.0
          %1386 = vmatmul.mubr.f32.gmra.mxu0 %v483
          %v1387 = vpop.f32.mrf.mxu0
          %v1388 = vadd.f32 0.0, %v1387
          %v1389 = vpop.f32.mrf.mxu0
          %v1390 = vadd.f32 0.0, %v1389
          %1391 = vdwg.mxu0
          %v1392 = vld [vmem:[%s9] sm:$0x3]
          %v1394 = vlaneseq
          %v1395 = vshrl.u32 %v1394, 7
          %v1396 = vsub.s32 0, %v1395
          %v1397 = vrot.slane %v1392, %v1396
          %v1398 = vlaneseq
          %v1399 = vshrl.u32 %v1398, 7
          %v1400 = vsub.s32 1, %v1399
          %v1401 = vrot.slane %v1392, %v1400
          %v1404 = vsub.f32 %v1388, %v1397
          %v1405 = vsub.f32 %v1390, %v1401
          %v1408 = vcombine.low %v1404, %v1405
          %v1409 = vcombine.high %v1404, %v1405
          %v1411 = vunpack.c.l.s4 1966171168
          %v1412 = vunpack.c.0.s8 %v1411
          %v1413 = vlaneseq
          %v1414 = vshrl.u32 %v1413, 7
          %v1415 = vsub.s32 %v1412, %v1414
          %v1416 = vrot.slane %v1408, %v1415
          %v1418 = vunpack.c.l.s4 1966171168
          %v1419 = vunpack.c.0.s8 %v1418
          %v1420 = vlaneseq
          %v1421 = vshrl.u32 %v1420, 7
          %v1422 = vsub.s32 %v1419, %v1421
          %v1423 = vrot.slane %v1409, %v1422
          %v1424 = vcombine.high %v1416, %v1416
          %v1425 = vcombine.high %v1423, %v1423
          %v1427 = vunpack.c.l.s4 1966171168
          %v1428 = vunpack.c.0.s8 %v1427
          %v1429 = vlaneseq
          %v1430 = vshrl.u32 %v1429, 7
          %v1431 = vsub.s32 %v1428, %v1430
          %v1432 = vrot.slane %v1416, %v1431
          %v1434 = vunpack.c.l.s4 1966171168
          %v1435 = vunpack.c.0.s8 %v1434
          %v1436 = vlaneseq
          %v1437 = vshrl.u32 %v1436, 7
          %v1438 = vsub.s32 %v1435, %v1437
          %v1439 = vrot.slane %v1423, %v1438
          %v1441 = vunpack.c.l.s4 1966171168
          %v1442 = vunpack.c.0.s8 %v1441
          %v1443 = vlaneseq
          %v1444 = vshrl.u32 %v1443, 7
          %v1445 = vsub.s32 %v1442, %v1444
          %v1446 = vrot.slane %v1424, %v1445
          %v1448 = vunpack.c.l.s4 1966171168
          %v1449 = vunpack.c.0.s8 %v1448
          %v1450 = vlaneseq
          %v1451 = vshrl.u32 %v1450, 7
          %v1452 = vsub.s32 %v1449, %v1451
          %v1453 = vrot.slane %v1425, %v1452
          %v1454 = vcombine.high %v1432, %v1432
          %v1455 = vcombine.high %v1439, %v1439
          %v1456 = vcombine.high %v1446, %v1446
          %v1457 = vcombine.high %v1453, %v1453
          %v1458 = vlaneseq
          %v1459 = vshrl.u32 %v1458, 7
          %v1460 = vsub.s32 0, %v1459
          %v1461 = vrot.slane %v1432, %v1460
          %v1462 = vlaneseq
          %v1463 = vshrl.u32 %v1462, 7
          %v1464 = vsub.s32 1, %v1463
          %v1465 = vrot.slane %v1432, %v1464
          %v1466 = vlaneseq
          %v1467 = vshrl.u32 %v1466, 7
          %v1468 = vsub.s32 0, %v1467
          %v1469 = vrot.slane %v1446, %v1468
          %v1470 = vlaneseq
          %v1471 = vshrl.u32 %v1470, 7
          %v1472 = vsub.s32 1, %v1471
          %v1473 = vrot.slane %v1446, %v1472
          %v1474 = vlaneseq
          %v1475 = vshrl.u32 %v1474, 7
          %v1476 = vsub.s32 0, %v1475
          %v1477 = vrot.slane %v1454, %v1476
          %v1478 = vlaneseq
          %v1479 = vshrl.u32 %v1478, 7
          %v1480 = vsub.s32 1, %v1479
          %v1481 = vrot.slane %v1454, %v1480
          %v1482 = vlaneseq
          %v1483 = vshrl.u32 %v1482, 7
          %v1484 = vsub.s32 0, %v1483
          %v1485 = vrot.slane %v1456, %v1484
          %v1486 = vlaneseq
          %v1487 = vshrl.u32 %v1486, 7
          %v1488 = vsub.s32 1, %v1487
          %v1489 = vrot.slane %v1456, %v1488
          %v1490 = vlaneseq
          %v1491 = vshrl.u32 %v1490, 7
          %v1492 = vsub.s32 0, %v1491
          %v1493 = vrot.slane %v1439, %v1492
          %v1494 = vlaneseq
          %v1495 = vshrl.u32 %v1494, 7
          %v1496 = vsub.s32 1, %v1495
          %v1497 = vrot.slane %v1439, %v1496
          %v1498 = vlaneseq
          %v1499 = vshrl.u32 %v1498, 7
          %v1500 = vsub.s32 0, %v1499
          %v1501 = vrot.slane %v1453, %v1500
          %v1502 = vlaneseq
          %v1503 = vshrl.u32 %v1502, 7
          %v1504 = vsub.s32 1, %v1503
          %v1505 = vrot.slane %v1453, %v1504
          %v1506 = vlaneseq
          %v1507 = vshrl.u32 %v1506, 7
          %v1508 = vsub.s32 0, %v1507
          %v1509 = vrot.slane %v1455, %v1508
          %v1510 = vlaneseq
          %v1511 = vshrl.u32 %v1510, 7
          %v1512 = vsub.s32 1, %v1511
          %v1513 = vrot.slane %v1455, %v1512
          %v1514 = vlaneseq
          %v1515 = vshrl.u32 %v1514, 7
          %v1516 = vsub.s32 0, %v1515
          %v1517 = vrot.slane %v1457, %v1516
          %v1518 = vlaneseq
          %v1519 = vshrl.u32 %v1518, 7
          %v1520 = vsub.s32 1, %v1519
          %v1521 = vrot.slane %v1457, %v1520
          %v1538 = vsub.f32 %v1304, %v1461
          %v1539 = vsub.f32 %v1306, %v1465
          %v1540 = vsub.f32 %v1310, %v1461
          %v1541 = vsub.f32 %v1312, %v1465
          %v1542 = vsub.f32 %v1304, %v1469
          %v1543 = vsub.f32 %v1306, %v1473
          %v1544 = vsub.f32 %v1310, %v1469
          %v1545 = vsub.f32 %v1312, %v1473
          %v1546 = vsub.f32 %v1304, %v1477
          %v1547 = vsub.f32 %v1306, %v1481
          %v1548 = vsub.f32 %v1310, %v1477
          %v1549 = vsub.f32 %v1312, %v1481
          %v1550 = vsub.f32 %v1304, %v1485
          %v1551 = vsub.f32 %v1306, %v1489
          %v1552 = vsub.f32 %v1310, %v1485
          %v1553 = vsub.f32 %v1312, %v1489
          %v1554 = vsub.f32 %v1304, %v1493
          %v1555 = vsub.f32 %v1306, %v1497
          %v1556 = vsub.f32 %v1310, %v1493
          %v1557 = vsub.f32 %v1312, %v1497
          %v1558 = vsub.f32 %v1304, %v1501
          %v1559 = vsub.f32 %v1306, %v1505
          %v1560 = vsub.f32 %v1310, %v1501
          %v1561 = vsub.f32 %v1312, %v1505
          %v1562 = vsub.f32 %v1304, %v1509
          %v1563 = vsub.f32 %v1306, %v1513
          %v1564 = vsub.f32 %v1310, %v1509
          %v1565 = vsub.f32 %v1312, %v1513
          %v1566 = vsub.f32 %v1304, %v1517
          %v1567 = vsub.f32 %v1306, %v1521
          %v1568 = vsub.f32 %v1310, %v1517
          %v1569 = vsub.f32 %v1312, %v1521
          %v1570 = vmax.f32 %v1538, 0.0
          %v1571 = vmax.f32 %v1539, 0.0
          %v1572 = vmax.f32 %v1540, 0.0
          %v1573 = vmax.f32 %v1541, 0.0
          %v1574 = vmax.f32 %v1542, 0.0
          %v1575 = vmax.f32 %v1543, 0.0
          %v1576 = vmax.f32 %v1544, 0.0
          %v1577 = vmax.f32 %v1545, 0.0
          %v1578 = vmax.f32 %v1546, 0.0
          %v1579 = vmax.f32 %v1547, 0.0
          %v1580 = vmax.f32 %v1548, 0.0
          %v1581 = vmax.f32 %v1549, 0.0
          %v1582 = vmax.f32 %v1550, 0.0
          %v1583 = vmax.f32 %v1551, 0.0
          %v1584 = vmax.f32 %v1552, 0.0
          %v1585 = vmax.f32 %v1553, 0.0
          %v1586 = vmax.f32 %v1554, 0.0
          %v1587 = vmax.f32 %v1555, 0.0
          %v1588 = vmax.f32 %v1556, 0.0
          %v1589 = vmax.f32 %v1557, 0.0
          %v1590 = vmax.f32 %v1558, 0.0
          %v1591 = vmax.f32 %v1559, 0.0
          %v1592 = vmax.f32 %v1560, 0.0
          %v1593 = vmax.f32 %v1561, 0.0
          %v1594 = vmax.f32 %v1562, 0.0
          %v1595 = vmax.f32 %v1563, 0.0
          %v1596 = vmax.f32 %v1564, 0.0
          %v1597 = vmax.f32 %v1565, 0.0
          %v1598 = vmax.f32 %v1566, 0.0
          %v1599 = vmax.f32 %v1567, 0.0
          %v1600 = vmax.f32 %v1568, 0.0
          %v1601 = vmax.f32 %v1569, 0.0
          %v1602 = vpack.c.bf16 %v1572, %v1570
          %v1603 = vpack.c.bf16 %v1573, %v1571
          %v1604 = vpack.c.bf16 %v1576, %v1574
          %v1605 = vpack.c.bf16 %v1577, %v1575
          %v1606 = vpack.c.bf16 %v1580, %v1578
          %v1607 = vpack.c.bf16 %v1581, %v1579
          %v1608 = vpack.c.bf16 %v1584, %v1582
          %v1609 = vpack.c.bf16 %v1585, %v1583
          %v1610 = vpack.c.bf16 %v1588, %v1586
          %v1611 = vpack.c.bf16 %v1589, %v1587
          %v1612 = vpack.c.bf16 %v1592, %v1590
          %v1613 = vpack.c.bf16 %v1593, %v1591
          %v1614 = vpack.c.bf16 %v1596, %v1594
          %v1615 = vpack.c.bf16 %v1597, %v1595
          %v1616 = vpack.c.bf16 %v1600, %v1598
          %v1617 = vpack.c.bf16 %v1601, %v1599
          %v1618 = vld [vmem:[#allocation13] sm:$0xff]
          %v1619 = vld [vmem:[#allocation13 + $0x8] sm:$0xff]
          %v1620 = vld [vmem:[#allocation13 + $0x10] sm:$0xff]
          %v1621 = vld [vmem:[#allocation13 + $0x18] sm:$0xff]
          %v1622 = vld [vmem:[#allocation13 + $0x20] sm:$0xff]
          %v1623 = vld [vmem:[#allocation13 + $0x28] sm:$0xff]
          %v1624 = vld [vmem:[#allocation13 + $0x30] sm:$0xff]
          %v1625 = vld [vmem:[#allocation13 + $0x38] sm:$0xff]
          %v1626 = vld [vmem:[#allocation13 + $0x40] sm:$0xff]
          %v1627 = vld [vmem:[#allocation13 + $0x48] sm:$0xff]
          %v1628 = vld [vmem:[#allocation13 + $0x50] sm:$0xff]
          %v1629 = vld [vmem:[#allocation13 + $0x58] sm:$0xff]
          %v1630 = vld [vmem:[#allocation13 + $0x60] sm:$0xff]
          %v1631 = vld [vmem:[#allocation13 + $0x68] sm:$0xff]
          %v1632 = vld [vmem:[#allocation13 + $0x70] sm:$0xff]
          %v1633 = vld [vmem:[#allocation13 + $0x78] sm:$0xff]
          %v1634 = vld [vmem:[#allocation13 + $0x80] sm:$0xff]
          %v1635 = vld [vmem:[#allocation13 + $0x88] sm:$0xff]
          %v1636 = vld [vmem:[#allocation13 + $0x90] sm:$0xff]
          %v1637 = vld [vmem:[#allocation13 + $0x98] sm:$0xff]
          %v1638 = vld [vmem:[#allocation13 + $0xa0] sm:$0xff]
          %v1639 = vld [vmem:[#allocation13 + $0xa8] sm:$0xff]
          %v1640 = vld [vmem:[#allocation13 + $0xb0] sm:$0xff]
          %v1641 = vld [vmem:[#allocation13 + $0xb8] sm:$0xff]
          %v1642 = vld [vmem:[#allocation13 + $0xc0] sm:$0xff]
          %v1643 = vld [vmem:[#allocation13 + $0xc8] sm:$0xff]
          %v1644 = vld [vmem:[#allocation13 + $0xd0] sm:$0xff]
          %v1645 = vld [vmem:[#allocation13 + $0xd8] sm:$0xff]
          %v1646 = vld [vmem:[#allocation13 + $0xe0] sm:$0xff]
          %v1647 = vld [vmem:[#allocation13 + $0xe8] sm:$0xff]
          %v1648 = vld [vmem:[#allocation13 + $0xf0] sm:$0xff]
          %v1649 = vld [vmem:[#allocation13 + $0xf8] sm:$0xff]
          %v1682 = vunpack.c.l.b16 %v1618
          %v1683 = vunpack.c.h.b16 %v1618
          %v1684 = vunpack.c.l.b16 %v1619
          %v1685 = vunpack.c.h.b16 %v1619
          %v1686 = vunpack.c.l.b16 %v1620
          %v1687 = vunpack.c.h.b16 %v1620
          %v1688 = vunpack.c.l.b16 %v1621
          %v1689 = vunpack.c.h.b16 %v1621
          %v1690 = vunpack.c.l.b16 %v1622
          %v1691 = vunpack.c.h.b16 %v1622
          %v1692 = vunpack.c.l.b16 %v1623
          %v1693 = vunpack.c.h.b16 %v1623
          %v1694 = vunpack.c.l.b16 %v1624
          %v1695 = vunpack.c.h.b16 %v1624
          %v1696 = vunpack.c.l.b16 %v1625
          %v1697 = vunpack.c.h.b16 %v1625
          %v1698 = vunpack.c.l.b16 %v1626
          %v1699 = vunpack.c.h.b16 %v1626
          %v1700 = vunpack.c.l.b16 %v1627
          %v1701 = vunpack.c.h.b16 %v1627
          %v1702 = vunpack.c.l.b16 %v1628
          %v1703 = vunpack.c.h.b16 %v1628
          %v1704 = vunpack.c.l.b16 %v1629
          %v1705 = vunpack.c.h.b16 %v1629
          %v1706 = vunpack.c.l.b16 %v1630
          %v1707 = vunpack.c.h.b16 %v1630
          %v1708 = vunpack.c.l.b16 %v1631
          %v1709 = vunpack.c.h.b16 %v1631
          %v1710 = vunpack.c.l.b16 %v1632
          %v1711 = vunpack.c.h.b16 %v1632
          %v1712 = vunpack.c.l.b16 %v1633
          %v1713 = vunpack.c.h.b16 %v1633
          %v1714 = vunpack.c.l.b16 %v1634
          %v1715 = vunpack.c.h.b16 %v1634
          %v1716 = vunpack.c.l.b16 %v1635
          %v1717 = vunpack.c.h.b16 %v1635
          %v1718 = vunpack.c.l.b16 %v1636
          %v1719 = vunpack.c.h.b16 %v1636
          %v1720 = vunpack.c.l.b16 %v1637
          %v1721 = vunpack.c.h.b16 %v1637
          %v1722 = vunpack.c.l.b16 %v1638
          %v1723 = vunpack.c.h.b16 %v1638
          %v1724 = vunpack.c.l.b16 %v1639
          %v1725 = vunpack.c.h.b16 %v1639
          %v1726 = vunpack.c.l.b16 %v1640
          %v1727 = vunpack.c.h.b16 %v1640
          %v1728 = vunpack.c.l.b16 %v1641
          %v1729 = vunpack.c.h.b16 %v1641
          %v1730 = vunpack.c.l.b16 %v1642
          %v1731 = vunpack.c.h.b16 %v1642
          %v1732 = vunpack.c.l.b16 %v1643
          %v1733 = vunpack.c.h.b16 %v1643
          %v1734 = vunpack.c.l.b16 %v1644
          %v1735 = vunpack.c.h.b16 %v1644
          %v1736 = vunpack.c.l.b16 %v1645
          %v1737 = vunpack.c.h.b16 %v1645
          %v1738 = vunpack.c.l.b16 %v1646
          %v1739 = vunpack.c.h.b16 %v1646
          %v1740 = vunpack.c.l.b16 %v1647
          %v1741 = vunpack.c.h.b16 %v1647
          %v1742 = vunpack.c.l.b16 %v1648
          %v1743 = vunpack.c.h.b16 %v1648
          %v1744 = vunpack.c.l.b16 %v1649
          %v1745 = vunpack.c.h.b16 %v1649
          %v1746 = vpack.c.b16 %v1684, %v1682
          %v1747 = vpack.c.b16 %v1685, %v1683
          %v1748 = vpack.c.b16 %v1688, %v1686
          %v1749 = vpack.c.b16 %v1689, %v1687
          %v1750 = vpack.c.b16 %v1692, %v1690
          %v1751 = vpack.c.b16 %v1693, %v1691
          %v1752 = vpack.c.b16 %v1696, %v1694
          %v1753 = vpack.c.b16 %v1697, %v1695
          %v1754 = vpack.c.b16 %v1700, %v1698
          %v1755 = vpack.c.b16 %v1701, %v1699
          %v1756 = vpack.c.b16 %v1704, %v1702
          %v1757 = vpack.c.b16 %v1705, %v1703
          %v1758 = vpack.c.b16 %v1708, %v1706
          %v1759 = vpack.c.b16 %v1709, %v1707
          %v1760 = vpack.c.b16 %v1712, %v1710
          %v1761 = vpack.c.b16 %v1713, %v1711
          %v1762 = vpack.c.b16 %v1716, %v1714
          %v1763 = vpack.c.b16 %v1717, %v1715
          %v1764 = vpack.c.b16 %v1720, %v1718
          %v1765 = vpack.c.b16 %v1721, %v1719
          %v1766 = vpack.c.b16 %v1724, %v1722
          %v1767 = vpack.c.b16 %v1725, %v1723
          %v1768 = vpack.c.b16 %v1728, %v1726
          %v1769 = vpack.c.b16 %v1729, %v1727
          %v1770 = vpack.c.b16 %v1732, %v1730
          %v1771 = vpack.c.b16 %v1733, %v1731
          %v1772 = vpack.c.b16 %v1736, %v1734
          %v1773 = vpack.c.b16 %v1737, %v1735
          %v1774 = vpack.c.b16 %v1740, %v1738
          %v1775 = vpack.c.b16 %v1741, %v1739
          %v1776 = vpack.c.b16 %v1744, %v1742
          %v1777 = vpack.c.b16 %v1745, %v1743
          %1810 = vmatprep.subr.bf16.mxu0 %v1761
          %1811 = vmatpush1.bf16.msra.mxu0 %v1760
          %1812 = vmatprep.subr.bf16.mxu0 %v1759
          %1813 = vmatpush1.bf16.msra.mxu0 %v1758
          %1814 = vmatprep.subr.bf16.mxu0 %v1757
          %1815 = vmatpush1.bf16.msra.mxu0 %v1756
          %1816 = vmatprep.subr.bf16.mxu0 %v1755
          %1817 = vmatpush1.bf16.msra.mxu0 %v1754
          %1818 = vmatprep.subr.bf16.mxu0 %v1753
          %1819 = vmatpush1.bf16.msra.mxu0 %v1752
          %1820 = vmatprep.subr.bf16.mxu0 %v1751
          %1821 = vmatpush1.bf16.msra.mxu0 %v1750
          %1822 = vmatprep.subr.bf16.mxu0 %v1749
          %1823 = vmatpush1.bf16.msra.mxu0 %v1748
          %1824 = vmatprep.subr.bf16.mxu0 %v1747
          %1825 = vmatpush1.bf16.msra.mxu0 %v1746
          %1826 = vmatprep.subr.bf16.mxu0 %v1777
          %1827 = vmatpush2.bf16.msra.mxu0 %v1776
          %1828 = vmatprep.subr.bf16.mxu0 %v1775
          %1829 = vmatpush2.bf16.msra.mxu0 %v1774
          %1830 = vmatprep.subr.bf16.mxu0 %v1773
          %1831 = vmatpush2.bf16.msra.mxu0 %v1772
          %1832 = vmatprep.subr.bf16.mxu0 %v1771
          %1833 = vmatpush2.bf16.msra.mxu0 %v1770
          %1834 = vmatprep.subr.bf16.mxu0 %v1769
          %1835 = vmatpush2.bf16.msra.mxu0 %v1768
          %1836 = vmatprep.subr.bf16.mxu0 %v1767
          %1837 = vmatpush2.bf16.msra.mxu0 %v1766
          %1838 = vmatprep.subr.bf16.mxu0 %v1765
          %1839 = vmatpush2.bf16.msra.mxu0 %v1764
          %1840 = vmatprep.subr.bf16.mxu0 %v1763
          %1841 = vmatpush2.bf16.msra.mxu0 %v1762
          %1842 = vmatprep.mubr.bf16.mxu0 %v1603
          %1843 = vmatmul.mubr.bf16.gmra.mxu0 %v1602
          %v1844 = vpop.f32.mrf.mxu0
          %v1845 = vadd.f32 0.0, %v1844
          %v1846 = vpop.f32.mrf.mxu0
          %v1847 = vadd.f32 0.0, %v1846
          %v1848 = vpop.f32.mrf.mxu0
          %v1849 = vadd.f32 0.0, %v1848
          %v1850 = vpop.f32.mrf.mxu0
          %v1851 = vadd.f32 0.0, %v1850
          %1852 = vmatprep.mubr.bf16.mxu0 %v1605
          %1853 = vmatmul.mubr.bf16.gmra.mxu0 %v1604
          %v1854 = vpop.f32.mrf.mxu0
          %v1855 = vadd.f32 0.0, %v1854
          %v1856 = vpop.f32.mrf.mxu0
          %v1857 = vadd.f32 0.0, %v1856
          %v1858 = vpop.f32.mrf.mxu0
          %v1859 = vadd.f32 0.0, %v1858
          %v1860 = vpop.f32.mrf.mxu0
          %v1861 = vadd.f32 0.0, %v1860
          %1862 = vmatprep.mubr.bf16.mxu0 %v1607
          %1863 = vmatmul.mubr.bf16.gmra.mxu0 %v1606
          %v1864 = vpop.f32.mrf.mxu0
          %v1865 = vadd.f32 0.0, %v1864
          %v1866 = vpop.f32.mrf.mxu0
          %v1867 = vadd.f32 0.0, %v1866
          %v1868 = vpop.f32.mrf.mxu0
          %v1869 = vadd.f32 0.0, %v1868
          %v1870 = vpop.f32.mrf.mxu0
          %v1871 = vadd.f32 0.0, %v1870
          %1872 = vmatprep.mubr.bf16.mxu0 %v1609
          %1873 = vmatmul.mubr.bf16.gmra.mxu0 %v1608
          %v1874 = vpop.f32.mrf.mxu0
          %v1875 = vadd.f32 0.0, %v1874
          %v1876 = vpop.f32.mrf.mxu0
          %v1877 = vadd.f32 0.0, %v1876
          %v1878 = vpop.f32.mrf.mxu0
          %v1879 = vadd.f32 0.0, %v1878
          %v1880 = vpop.f32.mrf.mxu0
          %v1881 = vadd.f32 0.0, %v1880
          %1882 = vmatprep.mubr.bf16.mxu0 %v1611
          %1883 = vmatmul.mubr.bf16.gmra.mxu0 %v1610
          %v1884 = vpop.f32.mrf.mxu0
          %v1885 = vadd.f32 0.0, %v1884
          %v1886 = vpop.f32.mrf.mxu0
          %v1887 = vadd.f32 0.0, %v1886
          %v1888 = vpop.f32.mrf.mxu0
          %v1889 = vadd.f32 0.0, %v1888
          %v1890 = vpop.f32.mrf.mxu0
          %v1891 = vadd.f32 0.0, %v1890
          %1892 = vmatprep.mubr.bf16.mxu0 %v1613
          %1893 = vmatmul.mubr.bf16.gmra.mxu0 %v1612
          %v1894 = vpop.f32.mrf.mxu0
          %v1895 = vadd.f32 0.0, %v1894
          %v1896 = vpop.f32.mrf.mxu0
          %v1897 = vadd.f32 0.0, %v1896
          %v1898 = vpop.f32.mrf.mxu0
          %v1899 = vadd.f32 0.0, %v1898
          %v1900 = vpop.f32.mrf.mxu0
          %v1901 = vadd.f32 0.0, %v1900
          %1902 = vmatprep.mubr.bf16.mxu0 %v1615
          %1903 = vmatmul.mubr.bf16.gmra.mxu0 %v1614
          %v1904 = vpop.f32.mrf.mxu0
          %v1905 = vadd.f32 0.0, %v1904
          %v1906 = vpop.f32.mrf.mxu0
          %v1907 = vadd.f32 0.0, %v1906
          %v1908 = vpop.f32.mrf.mxu0
          %v1909 = vadd.f32 0.0, %v1908
          %v1910 = vpop.f32.mrf.mxu0
          %v1911 = vadd.f32 0.0, %v1910
          %1912 = vmatprep.mubr.bf16.mxu0 %v1617
          %1913 = vmatmul.mubr.bf16.gmra.mxu0 %v1616
          %v1914 = vpop.f32.mrf.mxu0
          %v1915 = vadd.f32 0.0, %v1914
          %v1916 = vpop.f32.mrf.mxu0
          %v1917 = vadd.f32 0.0, %v1916
          %v1918 = vpop.f32.mrf.mxu0
          %v1919 = vadd.f32 0.0, %v1918
          %v1920 = vpop.f32.mrf.mxu0
          %v1921 = vadd.f32 0.0, %v1920
          %1922 = vdwg.mxu0
          %v1923 = vadd.f32 %v1845, %v1158
          %v1924 = vadd.f32 %v1847, %v1206
          %v1925 = vadd.f32 %v1849, %v1159
          %v1926 = vadd.f32 %v1851, %v1207
          %v1927 = vadd.f32 %v1855, %v1160
          %v1928 = vadd.f32 %v1857, %v1208
          %v1929 = vadd.f32 %v1859, %v1161
          %v1930 = vadd.f32 %v1861, %v1209
          %v1931 = vadd.f32 %v1865, %v1162
          %v1932 = vadd.f32 %v1867, %v1210
          %v1933 = vadd.f32 %v1869, %v1163
          %v1934 = vadd.f32 %v1871, %v1211
          %v1935 = vadd.f32 %v1875, %v1164
          %v1936 = vadd.f32 %v1877, %v1212
          %v1937 = vadd.f32 %v1879, %v1165
          %v1938 = vadd.f32 %v1881, %v1213
          %v1939 = vadd.f32 %v1885, %v1166
          %v1940 = vadd.f32 %v1887, %v1214
          %v1941 = vadd.f32 %v1889, %v1167
          %v1942 = vadd.f32 %v1891, %v1215
          %v1943 = vadd.f32 %v1895, %v1168
          %v1944 = vadd.f32 %v1897, %v1216
          %v1945 = vadd.f32 %v1899, %v1169
          %v1946 = vadd.f32 %v1901, %v1217
          %v1947 = vadd.f32 %v1905, %v1170
          %v1948 = vadd.f32 %v1907, %v1218
          %v1949 = vadd.f32 %v1909, %v1171
          %v1950 = vadd.f32 %v1911, %v1219
          %v1951 = vadd.f32 %v1915, %v1172
          %v1952 = vadd.f32 %v1917, %v1220
          %v1953 = vadd.f32 %v1919, %v1173
          %v1954 = vadd.f32 %v1921, %v1221
          %v1955 = vmax.f32 %v1923, %v1925
          %v1956 = vrot.slane %v1955, 4
          %v1957 = vmax.f32 %v1955, %v1956
          %v1958 = vrot.slane %v1957, 2
          %v1959 = vmax.f32 %v1957, %v1958
          %v1960 = vrot.slane %v1959, 1
          %v1961 = vmax.f32 %v1959, %v1960
          %v1962 = vmax.f32 %v1924, %v1926
          %v1963 = vrot.slane %v1962, 4
          %v1964 = vmax.f32 %v1962, %v1963
          %v1965 = vrot.slane %v1964, 2
          %v1966 = vmax.f32 %v1964, %v1965
          %v1967 = vrot.slane %v1966, 1
          %v1968 = vmax.f32 %v1966, %v1967
          %v1969 = vmax.f32 %v1927, %v1929
          %v1970 = vrot.slane %v1969, 4
          %v1971 = vmax.f32 %v1969, %v1970
          %v1972 = vrot.slane %v1971, 2
          %v1973 = vmax.f32 %v1971, %v1972
          %v1974 = vrot.slane %v1973, 1
          %v1975 = vmax.f32 %v1973, %v1974
          %v1976 = vmax.f32 %v1928, %v1930
          %v1977 = vrot.slane %v1976, 4
          %v1978 = vmax.f32 %v1976, %v1977
          %v1979 = vrot.slane %v1978, 2
          %v1980 = vmax.f32 %v1978, %v1979
          %v1981 = vrot.slane %v1980, 1
          %v1982 = vmax.f32 %v1980, %v1981
          %v1983 = vmax.f32 %v1931, %v1933
          %v1984 = vrot.slane %v1983, 4
          %v1985 = vmax.f32 %v1983, %v1984
          %v1986 = vrot.slane %v1985, 2
          %v1987 = vmax.f32 %v1985, %v1986
          %v1988 = vrot.slane %v1987, 1
          %v1989 = vmax.f32 %v1987, %v1988
          %v1990 = vmax.f32 %v1932, %v1934
          %v1991 = vrot.slane %v1990, 4
          %v1992 = vmax.f32 %v1990, %v1991
          %v1993 = vrot.slane %v1992, 2
          %v1994 = vmax.f32 %v1992, %v1993
          %v1995 = vrot.slane %v1994, 1
          %v1996 = vmax.f32 %v1994, %v1995
          %v1997 = vmax.f32 %v1935, %v1937
          %v1998 = vrot.slane %v1997, 4
          %v1999 = vmax.f32 %v1997, %v1998
          %v2000 = vrot.slane %v1999, 2
          %v2001 = vmax.f32 %v1999, %v2000
          %v2002 = vrot.slane %v2001, 1
          %v2003 = vmax.f32 %v2001, %v2002
          %v2004 = vmax.f32 %v1936, %v1938
          %v2005 = vrot.slane %v2004, 4
          %v2006 = vmax.f32 %v2004, %v2005
          %v2007 = vrot.slane %v2006, 2
          %v2008 = vmax.f32 %v2006, %v2007
          %v2009 = vrot.slane %v2008, 1
          %v2010 = vmax.f32 %v2008, %v2009
          %v2011 = vmax.f32 %v1939, %v1941
          %v2012 = vrot.slane %v2011, 4
          %v2013 = vmax.f32 %v2011, %v2012
          %v2014 = vrot.slane %v2013, 2
          %v2015 = vmax.f32 %v2013, %v2014
          %v2016 = vrot.slane %v2015, 1
          %v2017 = vmax.f32 %v2015, %v2016
          %v2018 = vmax.f32 %v1940, %v1942
          %v2019 = vrot.slane %v2018, 4
          %v2020 = vmax.f32 %v2018, %v2019
          %v2021 = vrot.slane %v2020, 2
          %v2022 = vmax.f32 %v2020, %v2021
          %v2023 = vrot.slane %v2022, 1
          %v2024 = vmax.f32 %v2022, %v2023
          %v2025 = vmax.f32 %v1943, %v1945
          %v2026 = vrot.slane %v2025, 4
          %v2027 = vmax.f32 %v2025, %v2026
          %v2028 = vrot.slane %v2027, 2
          %v2029 = vmax.f32 %v2027, %v2028
          %v2030 = vrot.slane %v2029, 1
          %v2031 = vmax.f32 %v2029, %v2030
          %v2032 = vmax.f32 %v1944, %v1946
          %v2033 = vrot.slane %v2032, 4
          %v2034 = vmax.f32 %v2032, %v2033
          %v2035 = vrot.slane %v2034, 2
          %v2036 = vmax.f32 %v2034, %v2035
          %v2037 = vrot.slane %v2036, 1
          %v2038 = vmax.f32 %v2036, %v2037
          %v2039 = vmax.f32 %v1947, %v1949
          %v2040 = vrot.slane %v2039, 4
          %v2041 = vmax.f32 %v2039, %v2040
          %v2042 = vrot.slane %v2041, 2
          %v2043 = vmax.f32 %v2041, %v2042
          %v2044 = vrot.slane %v2043, 1
          %v2045 = vmax.f32 %v2043, %v2044
          %v2046 = vmax.f32 %v1948, %v1950
          %v2047 = vrot.slane %v2046, 4
          %v2048 = vmax.f32 %v2046, %v2047
          %v2049 = vrot.slane %v2048, 2
          %v2050 = vmax.f32 %v2048, %v2049
          %v2051 = vrot.slane %v2050, 1
          %v2052 = vmax.f32 %v2050, %v2051
          %v2053 = vmax.f32 %v1951, %v1953
          %v2054 = vrot.slane %v2053, 4
          %v2055 = vmax.f32 %v2053, %v2054
          %v2056 = vrot.slane %v2055, 2
          %v2057 = vmax.f32 %v2055, %v2056
          %v2058 = vrot.slane %v2057, 1
          %v2059 = vmax.f32 %v2057, %v2058
          %v2060 = vmax.f32 %v1952, %v1954
          %v2061 = vrot.slane %v2060, 4
          %v2062 = vmax.f32 %v2060, %v2061
          %v2063 = vrot.slane %v2062, 2
          %v2064 = vmax.f32 %v2062, %v2063
          %v2065 = vrot.slane %v2064, 1
          %v2066 = vmax.f32 %v2064, %v2065
          %2075 = vrot.lane.b32.xlu0 %v1961, 96
          %v2076 = vpop.permute.xlu0 %2075
          %2077 = vrot.lane.b32.xlu0 %v1975, 96
          %v2078 = vpop.permute.xlu0 %2077
          %2079 = vrot.lane.b32.xlu0 %v1989, 96
          %v2080 = vpop.permute.xlu0 %2079
          %2081 = vrot.lane.b32.xlu0 %v2003, 96
          %v2082 = vpop.permute.xlu0 %2081
          %2083 = vrot.lane.b32.xlu0 %v2017, 96
          %v2084 = vpop.permute.xlu0 %2083
          %2085 = vrot.lane.b32.xlu0 %v2031, 96
          %v2086 = vpop.permute.xlu0 %2085
          %2087 = vrot.lane.b32.xlu0 %v2045, 96
          %v2088 = vpop.permute.xlu0 %2087
          %2089 = vrot.lane.b32.xlu0 %v2059, 96
          %v2090 = vpop.permute.xlu0 %2089
          %v2099 = vmax.f32 %v1961, %v2076
          %v2100 = vmax.f32 %v1975, %v2078
          %v2101 = vmax.f32 %v1989, %v2080
          %v2102 = vmax.f32 %v2003, %v2082
          %v2103 = vmax.f32 %v2017, %v2084
          %v2104 = vmax.f32 %v2031, %v2086
          %v2105 = vmax.f32 %v2045, %v2088
          %v2106 = vmax.f32 %v2059, %v2090
          %2107 = vrot.lane.b32.xlu0 %v1961, 64
          %v2108 = vpop.permute.xlu0 %2107
          %2109 = vrot.lane.b32.xlu0 %v1975, 64
          %v2110 = vpop.permute.xlu0 %2109
          %2111 = vrot.lane.b32.xlu0 %v1989, 64
          %v2112 = vpop.permute.xlu0 %2111
          %2113 = vrot.lane.b32.xlu0 %v2003, 64
          %v2114 = vpop.permute.xlu0 %2113
          %2115 = vrot.lane.b32.xlu0 %v2017, 64
          %v2116 = vpop.permute.xlu0 %2115
          %2117 = vrot.lane.b32.xlu0 %v2031, 64
          %v2118 = vpop.permute.xlu0 %2117
          %2119 = vrot.lane.b32.xlu0 %v2045, 64
          %v2120 = vpop.permute.xlu0 %2119
          %2121 = vrot.lane.b32.xlu0 %v2059, 64
          %v2122 = vpop.permute.xlu0 %2121
          %v2131 = vmax.f32 %v2099, %v2108
          %v2132 = vmax.f32 %v2100, %v2110
          %v2133 = vmax.f32 %v2101, %v2112
          %v2134 = vmax.f32 %v2102, %v2114
          %v2135 = vmax.f32 %v2103, %v2116
          %v2136 = vmax.f32 %v2104, %v2118
          %v2137 = vmax.f32 %v2105, %v2120
          %v2138 = vmax.f32 %v2106, %v2122
          %2139 = vrot.lane.b32.xlu0 %v1961, 32
          %v2140 = vpop.permute.xlu0 %2139
          %2141 = vrot.lane.b32.xlu0 %v1975, 32
          %v2142 = vpop.permute.xlu0 %2141
          %2143 = vrot.lane.b32.xlu0 %v1989, 32
          %v2144 = vpop.permute.xlu0 %2143
          %2145 = vrot.lane.b32.xlu0 %v2003, 32
          %v2146 = vpop.permute.xlu0 %2145
          %2147 = vrot.lane.b32.xlu0 %v2017, 32
          %v2148 = vpop.permute.xlu0 %2147
          %2149 = vrot.lane.b32.xlu0 %v2031, 32
          %v2150 = vpop.permute.xlu0 %2149
          %2151 = vrot.lane.b32.xlu0 %v2045, 32
          %v2152 = vpop.permute.xlu0 %2151
          %2153 = vrot.lane.b32.xlu0 %v2059, 32
          %v2154 = vpop.permute.xlu0 %2153
          %v2163 = vmax.f32 %v2131, %v2140
          %v2164 = vmax.f32 %v2132, %v2142
          %v2165 = vmax.f32 %v2133, %v2144
          %v2166 = vmax.f32 %v2134, %v2146
          %v2167 = vmax.f32 %v2135, %v2148
          %v2168 = vmax.f32 %v2136, %v2150
          %v2169 = vmax.f32 %v2137, %v2152
          %v2170 = vmax.f32 %v2138, %v2154
          %v2171 = vmax.f32 %v2163, %v1968
          %v2172 = vmax.f32 %v2164, %v1982
          %v2173 = vmax.f32 %v2165, %v1996
          %v2174 = vmax.f32 %v2166, %v2010
          %v2175 = vmax.f32 %v2167, %v2024
          %v2176 = vmax.f32 %v2168, %v2038
          %v2177 = vmax.f32 %v2169, %v2052
          %v2178 = vmax.f32 %v2170, %v2066
          %2187 = vrot.lane.b32.xlu0 %v1968, 96
          %v2188 = vpop.permute.xlu0 %2187
          %2189 = vrot.lane.b32.xlu0 %v1982, 96
          %v2190 = vpop.permute.xlu0 %2189
          %2191 = vrot.lane.b32.xlu0 %v1996, 96
          %v2192 = vpop.permute.xlu0 %2191
          %2193 = vrot.lane.b32.xlu0 %v2010, 96
          %v2194 = vpop.permute.xlu0 %2193
          %2195 = vrot.lane.b32.xlu0 %v2024, 96
          %v2196 = vpop.permute.xlu0 %2195
          %2197 = vrot.lane.b32.xlu0 %v2038, 96
          %v2198 = vpop.permute.xlu0 %2197
          %2199 = vrot.lane.b32.xlu0 %v2052, 96
          %v2200 = vpop.permute.xlu0 %2199
          %2201 = vrot.lane.b32.xlu0 %v2066, 96
          %v2202 = vpop.permute.xlu0 %2201
          %v2211 = vmax.f32 %v2171, %v2188
          %v2212 = vmax.f32 %v2172, %v2190
          %v2213 = vmax.f32 %v2173, %v2192
          %v2214 = vmax.f32 %v2174, %v2194
          %v2215 = vmax.f32 %v2175, %v2196
          %v2216 = vmax.f32 %v2176, %v2198
          %v2217 = vmax.f32 %v2177, %v2200
          %v2218 = vmax.f32 %v2178, %v2202
          %2219 = vrot.lane.b32.xlu0 %v1968, 64
          %v2220 = vpop.permute.xlu0 %2219
          %2221 = vrot.lane.b32.xlu0 %v1982, 64
          %v2222 = vpop.permute.xlu0 %2221
          %2223 = vrot.lane.b32.xlu0 %v1996, 64
          %v2224 = vpop.permute.xlu0 %2223
          %2225 = vrot.lane.b32.xlu0 %v2010, 64
          %v2226 = vpop.permute.xlu0 %2225
          %2227 = vrot.lane.b32.xlu0 %v2024, 64
          %v2228 = vpop.permute.xlu0 %2227
          %2229 = vrot.lane.b32.xlu0 %v2038, 64
          %v2230 = vpop.permute.xlu0 %2229
          %2231 = vrot.lane.b32.xlu0 %v2052, 64
          %v2232 = vpop.permute.xlu0 %2231
          %2233 = vrot.lane.b32.xlu0 %v2066, 64
          %v2234 = vpop.permute.xlu0 %2233
          %v2243 = vmax.f32 %v2211, %v2220
          %v2244 = vmax.f32 %v2212, %v2222
          %v2245 = vmax.f32 %v2213, %v2224
          %v2246 = vmax.f32 %v2214, %v2226
          %v2247 = vmax.f32 %v2215, %v2228
          %v2248 = vmax.f32 %v2216, %v2230
          %v2249 = vmax.f32 %v2217, %v2232
          %v2250 = vmax.f32 %v2218, %v2234
          %2251 = vrot.lane.b32.xlu0 %v1968, 32
          %v2252 = vpop.permute.xlu0 %2251
          %2253 = vrot.lane.b32.xlu0 %v1982, 32
          %v2254 = vpop.permute.xlu0 %2253
          %2255 = vrot.lane.b32.xlu0 %v1996, 32
          %v2256 = vpop.permute.xlu0 %2255
          %2257 = vrot.lane.b32.xlu0 %v2010, 32
          %v2258 = vpop.permute.xlu0 %2257
          %2259 = vrot.lane.b32.xlu0 %v2024, 32
          %v2260 = vpop.permute.xlu0 %2259
          %2261 = vrot.lane.b32.xlu0 %v2038, 32
          %v2262 = vpop.permute.xlu0 %2261
          %2263 = vrot.lane.b32.xlu0 %v2052, 32
          %v2264 = vpop.permute.xlu0 %2263
          %2265 = vrot.lane.b32.xlu0 %v2066, 32
          %v2266 = vpop.permute.xlu0 %2265
          %v2275 = vmax.f32 %v2243, %v2252
          %v2276 = vmax.f32 %v2244, %v2254
          %v2277 = vmax.f32 %v2245, %v2256
          %v2278 = vmax.f32 %v2246, %v2258
          %v2279 = vmax.f32 %v2247, %v2260
          %v2280 = vmax.f32 %v2248, %v2262
          %v2281 = vmax.f32 %v2249, %v2264
          %v2282 = vmax.f32 %v2250, %v2266
          %v2283 = vld [vmem:[%s449] sm:$0xff]
          %v2292 = vrot.slane %v2276, 7
          %vm2293 = vcmask 1041409
          %v2294 = vsel %vm2293, %v2292, %v2275
          %v2295 = vrot.slane %v2277, 6
          %vm2296 = vcmask 1042434
          %v2297 = vsel %vm2296, %v2295, %v2294
          %v2298 = vrot.slane %v2278, 5
          %vm2299 = vcmask 1043459
          %v2300 = vsel %vm2299, %v2298, %v2297
          %v2301 = vrot.slane %v2279, 4
          %vm2302 = vcmask 1044484
          %v2303 = vsel %vm2302, %v2301, %v2300
          %v2304 = vrot.slane %v2280, 3
          %vm2305 = vcmask 1045509
          %v2306 = vsel %vm2305, %v2304, %v2303
          %v2307 = vrot.slane %v2281, 2
          %vm2308 = vcmask 1046534
          %v2309 = vsel %vm2308, %v2307, %v2306
          %v2310 = vrot.slane %v2282, 1
          %vm2311 = vcmask 1047559
          %v2312 = vsel %vm2311, %v2310, %v2309
          %v2314 = vmax.f32 %v2283, %v2312
          %2315 = vst.msk [vmem:[%s449] sm:$0xff] %vm1123, %v2314
        $region84: #{tpu_custom_call.1} parent=55 // pred_fallthru
          _
        %s2316 = sand.u32 %s272, 1
        %s2317 = scalar_lea.sflag [#allocation7], %s2316
        %s2318 = sand.u32 %s272, 1
        %s2319 = smul.addr %s2318, 8
        %s2320 = scalar_lea.vmem [#allocation14], %s2319
        // Predicated region
        $region85: #{tpu_custom_call.1} parent=55 // pred_check
          %p2321 = pneg %p282
        $region86: #{tpu_custom_call.1} parent=55 // pred_check_branch
          %2323 = sbr.rel (%p2321) target = $region88
        $region87: #{tpu_custom_call.1} parent=55 // pred_region
          %s2325 = ssub.s32 128, 128
          %2326 = vsyncadd %s2317, %s2325
          %s2327 = smul.addr %s42, 128
          %s2328 = scalar_lea.hbm %s11, %s2327
          %s2330 = sshll.u32 %s2320, 4
          %s2331 = int_to_ptr.vmem [resolvable:$true] %s2330
          %2333 = dma.vmem_to_hbm [thread:$0]  %s2331, 128, %s2328, %s2317
        $region88: #{tpu_custom_call.1} parent=55 // pred_fallthru
          _
      $region56: #{tpu_custom_call.1} parent=5 // pred_fallthru
        _
      %p2334 = scmp.le.s32.totalorder 2, %s33
      // Predicated region
      $region89: #{tpu_custom_call.1} parent=5 // pred_check
        %p2335 = pneg %p2334
      $region90: #{tpu_custom_call.1} parent=5 // pred_check_branch
        %2337 = sbr.rel (%p2335) target = $region92
      $region91: #{tpu_custom_call.1} parent=5 // pred_region
        %s2338 = ssub.s32 %s33, 2
        // Predicated region
        $region93: #{tpu_custom_call.1} parent=91 // pred_check
          %p2339 = pneg %p288
        $region94: #{tpu_custom_call.1} parent=91 // pred_check_branch
          %2341 = sbr.rel (%p2339) target = $region96
        $region95: #{tpu_custom_call.1} parent=91 // pred_region
          %s2342 = sand.u32 %s273, 1
          %s2343 = scalar_lea.sflag [#allocation7], %s2342
          %s2344 = sand.u32 %s273, 1
          %s2345 = smul.addr %s2344, 8
          %s2346 = scalar_lea.vmem [#allocation14], %s2345
          %2347 = dma.done %s2343, 128
        $region96: #{tpu_custom_call.1} parent=91 // pred_fallthru
          _
      $region92: #{tpu_custom_call.1} parent=5 // pred_fallthru
        _
    $region6: #{tpu_custom_call.1} parent=1 // loop_footer
      %s37 = sadd.s32 1, %s33
    $region7: #{tpu_custom_call.1} parent=1 // loop_footer_branch
      %32 = sbr.rel target = $region3
    $region8: #{tpu_custom_call.1} parent=1 // loop_exit
      _
    %2348 = vsyncpa [#allocation6], 1
    %s2349 = scalar_lea.sflag [#allocation6], 1
    %2350 = vsyncpa %s2349, 1
    %2351 = vsyncpa [#allocation9], 1
    %2352 = vsyncpa [#allocation12], 1
    %2353 = vsyncpa [#allocation7], 1
    %s2354 = scalar_lea.sflag [#allocation7], 1
    %2355 = vsyncpa %s2354, 1

</llo_original>
